<compile_context>
chip_gen: v7x
topology: tpu7x:2x2x1
jax: 0.10.0
libtpu: 0.0.40
codegen_flags: <defaults>
</compile_context>

<pallas_src>
import math

import jax
import jax.numpy as jnp
from jax.experimental import pallas as pl
from jax.experimental.pallas import tpu as pltpu


# --------------------------- fused forward kernel ---------------------------
def make_fused_kernel(S: int, T: int, H: int):
    """Whole RnnDiscriminator forward in one kernel (everything VMEM-resident)."""

    def kernel(x_ref,                                   # (S*T, I)  f32
               w0f_ih, w0f_hh, b0f,                     # layer0 fwd (bf16/bf16/f32)
               w0r_ih, w0r_hh, b0r,                     # layer0 rev
               w1f_ih, w1f_hh, b1f,                     # layer1 fwd
               w1r_ih, w1r_hh, b1r,                     # layer1 rev
               gamma_ref, beta_ref, fcw_ref, fcb_ref,   # head: (T,2H)x3, (1,1)
               out_ref, hn_ref, cn_ref):

        # ----------------- LSTM recurrence (gate order i, f, o, g) ----------
        def recur(gx, whh_ref, reverse):
            """gx: list of S precomputed (T, 4H) f32 input projections."""
            whh = whh_ref[...]                          # (H, 4H) bf16
            h = jnp.zeros((T, H), jnp.float32)
            c = jnp.zeros((T, H), jnp.float32)
            ys = [None] * S
            order = range(S - 1, -1, -1) if reverse else range(S)
            for s in order:                             # fully unrolled
                gates = gx[s] + jnp.dot(h.astype(jnp.bfloat16), whh,
                                        preferred_element_type=jnp.float32)
                sig = jax.nn.sigmoid(gates[:, :3 * H])  # i | f | o  (one EUP pass)
                g_g = jnp.tanh(gates[:, 3 * H:])        # g          (one EUP pass)
                i_g = sig[:, :H]
                f_g = sig[:, H:2 * H]
                o_g = sig[:, 2 * H:3 * H]
                c = f_g * c + i_g * g_g
                h = o_g * jnp.tanh(c)
                ys[s] = h
            return ys, h, c

        # ----------------- layer 0 (input size I) ---------------------------
        x_bf = x_ref[...].astype(jnp.bfloat16)          # (S*T, I)

        def proj0(wih_ref, b_ref):
            g = jnp.dot(x_bf, wih_ref[...],
                        preferred_element_type=jnp.float32) + b_ref[...]
            return [g[s * T:(s + 1) * T, :] for s in range(S)]

        y0f, h0f, c0f = recur(proj0(w0f_ih, b0f), w0f_hh, reverse=False)
        y0r, h0r, c0r = recur(proj0(w0r_ih, b0r), w0r_hh, reverse=True)

        # ----------------- layer 1 (input = [y0f ; y0r], split weights) -----
        y0f_bf = [y.astype(jnp.bfloat16) for y in y0f]
        y0r_bf = [y.astype(jnp.bfloat16) for y in y0r]

        def proj1(wih_ref, b_ref):
            w = wih_ref[...]                            # (2H, 4H) bf16
            wa = w[:H, :]                               # multiplies fwd half
            wb = w[H:, :]                               # multiplies rev half
            b = b_ref[...]
            return [jnp.dot(y0f_bf[s], wa, preferred_element_type=jnp.float32)
                    + jnp.dot(y0r_bf[s], wb, preferred_element_type=jnp.float32)
                    + b
                    for s in range(S)]

        y1f, h1f, c1f = recur(proj1(w1f_ih, b1f), w1f_hh, reverse=False)
        y1r, h1r, c1r = recur(proj1(w1r_ih, b1r), w1r_hh, reverse=True)

        # final states, PyTorch ordering [l0 fwd, l0 rev, l1 fwd, l1 rev]
        hn_ref[0] = h0f; hn_ref[1] = h0r; hn_ref[2] = h1f; hn_ref[3] = h1r
        cn_ref[0] = c0f; cn_ref[1] = c0r; cn_ref[2] = c1f; cn_ref[3] = c1r

        # --------- head: BatchNorm1d (training stats, eps=1e-5) + FC + sigmoid
        # y[s] = sum_f (x[s,f]-mean_f)*(gamma_f*rsqrt(var_f+eps)*w_f)
        #        + sum_f beta_f*w_f + b_fc          (features split fwd / rev)
        gamma = gamma_ref[...]                          # (T, 2H)
        beta = beta_ref[...]
        w_fc = fcw_ref[...]
        g_f, g_r = gamma[:, :H], gamma[:, H:]
        be_f, be_r = beta[:, :H], beta[:, H:]
        w_f, w_r = w_fc[:, :H], w_fc[:, H:]

        inv_s = 1.0 / S
        mean_f = sum(y1f) * inv_s                       # (T, H)
        mean_r = sum(y1r) * inv_s
        var_f = sum((y - mean_f) ** 2 for y in y1f) * inv_s   # biased variance
        var_r = sum((y - mean_r) ** 2 for y in y1r) * inv_s
        scale_f = g_f * jax.lax.rsqrt(var_f + 1e-5) * w_f
        scale_r = g_r * jax.lax.rsqrt(var_r + 1e-5) * w_r

        const = jnp.sum(be_f * w_f + be_r * w_r, axis=1, keepdims=True)   # (T,1)
        const = jnp.sum(const, axis=0, keepdims=True) + fcb_ref[...]      # (1,1)

        rows = []
        for s in range(S):
            contrib = (y1f[s] - mean_f) * scale_f + (y1r[s] - mean_r) * scale_r
            v = jnp.sum(contrib, axis=1, keepdims=True)                   # (T,1)
            rows.append(jnp.sum(v, axis=0, keepdims=True))                # (1,1)

        row_idx = jax.lax.broadcasted_iota(jnp.int32, (S, 1), 0)          # (S,1)
        logits = jnp.zeros((S, 1), jnp.float32)
        for s in range(S):
            logits = logits + jnp.where(row_idx == s, rows[s], 0.0)
        out_ref[...] = jax.nn.sigmoid(logits + const)

    return kernel


# --------------------------- weight preparation ------------------------------
def _reorder_gates(m):
    """Reorder 4H gate blocks along the last axis: (i,f,g,o) -> (i,f,o,g)."""
    i, f, g, o = jnp.split(m, 4, axis=-1)
    return jnp.concatenate([i, f, o, g], axis=-1)


def _prep_direction(w_ih, w_hh, b_ih, b_hh):
    wih_t = _reorder_gates(jnp.transpose(w_ih)).astype(jnp.bfloat16)   # (I_l, 4H)
    whh_t = _reorder_gates(jnp.transpose(w_hh)).astype(jnp.bfloat16)   # (H, 4H)
    b = _reorder_gates((b_ih + b_hh).reshape(1, -1)).astype(jnp.float32)
    return wih_t, whh_t, b


# ------------------------------- forward -------------------------------------
def rnn_discriminator_forward(x, params):
    S, T, I = x.shape
    H = params["lstm"]["l0_f"][1].shape[1]

    prepped = [_prep_direction(*params["lstm"][k])
               for k in ("l0_f", "l0_r", "l1_f", "l1_r")]
    flat_w = [w for triple in prepped for w in triple]          # 12 arrays

    gamma2d = params["bn_gamma"].reshape(T, 2 * H)
    beta2d = params["bn_beta"].reshape(T, 2 * H)
    fcw2d = params["fc_w"].reshape(T, 2 * H)
    fcb = params["fc_b"].reshape(1, 1)

    vm = pl.BlockSpec(memory_space=pltpu.MemorySpace.VMEM)
    out, h_n, c_n = pl.pallas_call(
        make_fused_kernel(S, T, H),
        out_shape=(jax.ShapeDtypeStruct((S, 1), jnp.float32),
                   jax.ShapeDtypeStruct((4, T, H), jnp.float32),
                   jax.ShapeDtypeStruct((4, T, H), jnp.float32)),
        in_specs=[vm] * 17,
        out_specs=(vm, vm, vm),
    )(x.reshape(S * T, I), *flat_w, gamma2d, beta2d, fcw2d, fcb)
    return out, (h_n, c_n)


# ------------------------------ parameters -----------------------------------
def init_params(key, input_size, hidden_size, mel_len, num_layers=2):
    params = {"lstm": {}}
    k = 1.0 / math.sqrt(hidden_size)
    keys = jax.random.split(key, num_layers * 2 * 4 + 2)
    idx = 0
    for layer in range(num_layers):
        in_size = input_size if layer == 0 else 2 * hidden_size
        for dname in ("f", "r"):
            w_ih = jax.random.uniform(keys[idx], (4 * hidden_size, in_size),
                                      jnp.float32, -k, k); idx += 1
            w_hh = jax.random.uniform(keys[idx], (4 * hidden_size, hidden_size),
                                      jnp.float32, -k, k); idx += 1
            b_ih = jax.random.uniform(keys[idx], (4 * hidden_size,),
                                      jnp.float32, -k, k); idx += 1
            b_hh = jax.random.uniform(keys[idx], (4 * hidden_size,),
                                      jnp.float32, -k, k); idx += 1
            params["lstm"][f"l{layer}_{dname}"] = (w_ih, w_hh, b_ih, b_hh)

    feat = hidden_size * mel_len * 2
    kf = 1.0 / math.sqrt(feat)
    params["fc_w"] = jax.random.uniform(keys[idx], (1, feat), jnp.float32, -kf, kf); idx += 1
    params["fc_b"] = jax.random.uniform(keys[idx], (1,), jnp.float32, -kf, kf); idx += 1
    params["bn_gamma"] = jnp.ones((feat,), jnp.float32)   # nn.BatchNorm1d defaults
    params["bn_beta"] = jnp.zeros((feat,), jnp.float32)
    return params


if __name__ == "__main__":
    # Small shapes consistent with the module: batch=2, mel_len=8, input=16, hidden=32.
    B, T, I, H = 2, 8, 16, 32
    key = jax.random.PRNGKey(0)
    pkey, xkey = jax.random.split(key)
    params = init_params(pkey, input_size=I, hidden_size=H, mel_len=T)
    x = jax.random.normal(xkey, (B, T, I), dtype=jnp.float32)

    fwd = jax.jit(rnn_discriminator_forward)
    out, (h_n, c_n) = fwd(x, params)
    jax.block_until_ready((out, h_n, c_n))

    assert out.shape == (B, 1) and out.dtype == jnp.float32
    assert h_n.shape == (4, T, H) and c_n.shape == (4, T, H)
    assert bool(jnp.all(jnp.isfinite(out)))
    assert bool(jnp.all((out >= 0.0) & (out <= 1.0)))
    print("KERNEL_OK")
</pallas_src>

<mosaic_0001>
module attributes {stable_mosaic.version = 11 : i64} {
  func.func @kernel(%arg0: memref<16x16xf32, #tpu.memory_space<vmem>>, %arg1: memref<16x128xbf16, #tpu.memory_space<vmem>>, %arg2: memref<32x128xbf16, #tpu.memory_space<vmem>>, %arg3: memref<1x128xf32, #tpu.memory_space<vmem>>, %arg4: memref<16x128xbf16, #tpu.memory_space<vmem>>, %arg5: memref<32x128xbf16, #tpu.memory_space<vmem>>, %arg6: memref<1x128xf32, #tpu.memory_space<vmem>>, %arg7: memref<64x128xbf16, #tpu.memory_space<vmem>>, %arg8: memref<32x128xbf16, #tpu.memory_space<vmem>>, %arg9: memref<1x128xf32, #tpu.memory_space<vmem>>, %arg10: memref<64x128xbf16, #tpu.memory_space<vmem>>, %arg11: memref<32x128xbf16, #tpu.memory_space<vmem>>, %arg12: memref<1x128xf32, #tpu.memory_space<vmem>>, %arg13: memref<8x64xf32, #tpu.memory_space<vmem>>, %arg14: memref<8x64xf32, #tpu.memory_space<vmem>>, %arg15: memref<8x64xf32, #tpu.memory_space<vmem>>, %arg16: memref<1x1xf32, #tpu.memory_space<vmem>>, %arg17: memref<2x1xf32, #tpu.memory_space<vmem>>, %arg18: memref<4x8x32xf32, #tpu.memory_space<vmem>>, %arg19: memref<4x8x32xf32, #tpu.memory_space<vmem>>) attributes {dimension_semantics = [], scalar_prefetch = 0 : i64, scratch_operands = 0 : i64, tpu.core_type = #tpu.core_type<tc>} {
    %c0 = arith.constant 0 : index
    %c0_0 = arith.constant 0 : index
    %0 = vector.load %arg0[%c0, %c0_0] : memref<16x16xf32, #tpu.memory_space<vmem>>, vector<16x16xf32>
    %1 = arith.truncf %0 : vector<16x16xf32> to vector<16x16xbf16>
    %c0_1 = arith.constant 0 : index
    %c0_2 = arith.constant 0 : index
    %2 = vector.load %arg1[%c0_1, %c0_2] : memref<16x128xbf16, #tpu.memory_space<vmem>>, vector<16x128xbf16>
    %cst = arith.constant dense<0.000000e+00> : vector<16x128xf32>
    %3 = tpu.matmul %1, %2, %cst {dimension_numbers = #tpu.dot_dimension_numbers<[1], [0], [0], [1], [0, 0, 1, 1], [], []>} : vector<16x16xbf16>, vector<16x128xbf16>, vector<16x128xf32> -> vector<16x128xf32>
    %c0_3 = arith.constant 0 : index
    %c0_4 = arith.constant 0 : index
    %4 = vector.load %arg3[%c0_3, %c0_4] : memref<1x128xf32, #tpu.memory_space<vmem>>, vector<1x128xf32>
    %5 = vector.broadcast %4 : vector<1x128xf32> to vector<16x128xf32>
    %6 = arith.addf %3, %5 : vector<16x128xf32>
    %7 = vector.extract_strided_slice %6 {offsets = [0, 0], sizes = [8, 128], strides = [1, 1]} : vector<16x128xf32> to vector<8x128xf32>
    %8 = vector.extract_strided_slice %6 {offsets = [8, 0], sizes = [8, 128], strides = [1, 1]} : vector<16x128xf32> to vector<8x128xf32>
    %c0_5 = arith.constant 0 : index
    %c0_6 = arith.constant 0 : index
    %9 = vector.load %arg2[%c0_5, %c0_6] : memref<32x128xbf16, #tpu.memory_space<vmem>>, vector<32x128xbf16>
    %cst_7 = arith.constant 0.000000e+00 : f32
    %10 = vector.broadcast %cst_7 : f32 to vector<8x32xf32>
    %cst_8 = arith.constant 0.000000e+00 : f32
    %11 = vector.broadcast %cst_8 : f32 to vector<8x32xf32>
    %12 = arith.truncf %10 : vector<8x32xf32> to vector<8x32xbf16>
    %cst_9 = arith.constant dense<0.000000e+00> : vector<8x128xf32>
    %13 = tpu.matmul %12, %9, %cst_9 {dimension_numbers = #tpu.dot_dimension_numbers<[1], [0], [0], [1], [0, 0, 1, 1], [], []>} : vector<8x32xbf16>, vector<32x128xbf16>, vector<8x128xf32> -> vector<8x128xf32>
    %14 = arith.addf %7, %13 : vector<8x128xf32>
    %15 = vector.extract_strided_slice %14 {offsets = [0, 0], sizes = [8, 96], strides = [1, 1]} : vector<8x128xf32> to vector<8x96xf32>
    %16 = arith.negf %15 : vector<8x96xf32>
    %17 = math.exp %16 : vector<8x96xf32>
    %cst_10 = arith.constant 1.000000e+00 : f32
    %18 = vector.broadcast %cst_10 : f32 to vector<8x96xf32>
    %19 = arith.addf %18, %17 : vector<8x96xf32>
    %20 = arith.divf %18, %19 : vector<8x96xf32>
    %21 = vector.extract_strided_slice %14 {offsets = [0, 96], sizes = [8, 32], strides = [1, 1]} : vector<8x128xf32> to vector<8x32xf32>
    %22 = math.tanh %21 : vector<8x32xf32>
    %23 = vector.extract_strided_slice %20 {offsets = [0, 0], sizes = [8, 32], strides = [1, 1]} : vector<8x96xf32> to vector<8x32xf32>
    %24 = vector.extract_strided_slice %20 {offsets = [0, 32], sizes = [8, 32], strides = [1, 1]} : vector<8x96xf32> to vector<8x32xf32>
    %25 = vector.extract_strided_slice %20 {offsets = [0, 64], sizes = [8, 32], strides = [1, 1]} : vector<8x96xf32> to vector<8x32xf32>
    %26 = arith.mulf %24, %11 : vector<8x32xf32>
    %27 = arith.mulf %23, %22 : vector<8x32xf32>
    %28 = arith.addf %26, %27 : vector<8x32xf32>
    %29 = math.tanh %28 : vector<8x32xf32>
    %30 = arith.mulf %25, %29 : vector<8x32xf32>
    %31 = arith.truncf %30 : vector<8x32xf32> to vector<8x32xbf16>
    %cst_11 = arith.constant dense<0.000000e+00> : vector<8x128xf32>
    %32 = tpu.matmul %31, %9, %cst_11 {dimension_numbers = #tpu.dot_dimension_numbers<[1], [0], [0], [1], [0, 0, 1, 1], [], []>} : vector<8x32xbf16>, vector<32x128xbf16>, vector<8x128xf32> -> vector<8x128xf32>
    %33 = arith.addf %8, %32 : vector<8x128xf32>
    %34 = vector.extract_strided_slice %33 {offsets = [0, 0], sizes = [8, 96], strides = [1, 1]} : vector<8x128xf32> to vector<8x96xf32>
    %35 = arith.negf %34 : vector<8x96xf32>
    %36 = math.exp %35 : vector<8x96xf32>
    %cst_12 = arith.constant 1.000000e+00 : f32
    %37 = vector.broadcast %cst_12 : f32 to vector<8x96xf32>
    %38 = arith.addf %37, %36 : vector<8x96xf32>
    %39 = arith.divf %37, %38 : vector<8x96xf32>
    %40 = vector.extract_strided_slice %33 {offsets = [0, 96], sizes = [8, 32], strides = [1, 1]} : vector<8x128xf32> to vector<8x32xf32>
    %41 = math.tanh %40 : vector<8x32xf32>
    %42 = vector.extract_strided_slice %39 {offsets = [0, 0], sizes = [8, 32], strides = [1, 1]} : vector<8x96xf32> to vector<8x32xf32>
    %43 = vector.extract_strided_slice %39 {offsets = [0, 32], sizes = [8, 32], strides = [1, 1]} : vector<8x96xf32> to vector<8x32xf32>
    %44 = vector.extract_strided_slice %39 {offsets = [0, 64], sizes = [8, 32], strides = [1, 1]} : vector<8x96xf32> to vector<8x32xf32>
    %45 = arith.mulf %43, %28 : vector<8x32xf32>
    %46 = arith.mulf %42, %41 : vector<8x32xf32>
    %47 = arith.addf %45, %46 : vector<8x32xf32>
    %48 = math.tanh %47 : vector<8x32xf32>
    %49 = arith.mulf %44, %48 : vector<8x32xf32>
    %c0_13 = arith.constant 0 : index
    %c0_14 = arith.constant 0 : index
    %50 = vector.load %arg4[%c0_13, %c0_14] : memref<16x128xbf16, #tpu.memory_space<vmem>>, vector<16x128xbf16>
    %cst_15 = arith.constant dense<0.000000e+00> : vector<16x128xf32>
    %51 = tpu.matmul %1, %50, %cst_15 {dimension_numbers = #tpu.dot_dimension_numbers<[1], [0], [0], [1], [0, 0, 1, 1], [], []>} : vector<16x16xbf16>, vector<16x128xbf16>, vector<16x128xf32> -> vector<16x128xf32>
    %c0_16 = arith.constant 0 : index
    %c0_17 = arith.constant 0 : index
    %52 = vector.load %arg6[%c0_16, %c0_17] : memref<1x128xf32, #tpu.memory_space<vmem>>, vector<1x128xf32>
    %53 = vector.broadcast %52 : vector<1x128xf32> to vector<16x128xf32>
    %54 = arith.addf %51, %53 : vector<16x128xf32>
    %55 = vector.extract_strided_slice %54 {offsets = [0, 0], sizes = [8, 128], strides = [1, 1]} : vector<16x128xf32> to vector<8x128xf32>
    %56 = vector.extract_strided_slice %54 {offsets = [8, 0], sizes = [8, 128], strides = [1, 1]} : vector<16x128xf32> to vector<8x128xf32>
    %c0_18 = arith.constant 0 : index
    %c0_19 = arith.constant 0 : index
    %57 = vector.load %arg5[%c0_18, %c0_19] : memref<32x128xbf16, #tpu.memory_space<vmem>>, vector<32x128xbf16>
    %cst_20 = arith.constant 0.000000e+00 : f32
    %58 = vector.broadcast %cst_20 : f32 to vector<8x32xf32>
    %cst_21 = arith.constant 0.000000e+00 : f32
    %59 = vector.broadcast %cst_21 : f32 to vector<8x32xf32>
    %60 = arith.truncf %58 : vector<8x32xf32> to vector<8x32xbf16>
    %cst_22 = arith.constant dense<0.000000e+00> : vector<8x128xf32>
    %61 = tpu.matmul %60, %57, %cst_22 {dimension_numbers = #tpu.dot_dimension_numbers<[1], [0], [0], [1], [0, 0, 1, 1], [], []>} : vector<8x32xbf16>, vector<32x128xbf16>, vector<8x128xf32> -> vector<8x128xf32>
    %62 = arith.addf %56, %61 : vector<8x128xf32>
    %63 = vector.extract_strided_slice %62 {offsets = [0, 0], sizes = [8, 96], strides = [1, 1]} : vector<8x128xf32> to vector<8x96xf32>
    %64 = arith.negf %63 : vector<8x96xf32>
    %65 = math.exp %64 : vector<8x96xf32>
    %cst_23 = arith.constant 1.000000e+00 : f32
    %66 = vector.broadcast %cst_23 : f32 to vector<8x96xf32>
    %67 = arith.addf %66, %65 : vector<8x96xf32>
    %68 = arith.divf %66, %67 : vector<8x96xf32>
    %69 = vector.extract_strided_slice %62 {offsets = [0, 96], sizes = [8, 32], strides = [1, 1]} : vector<8x128xf32> to vector<8x32xf32>
    %70 = math.tanh %69 : vector<8x32xf32>
    %71 = vector.extract_strided_slice %68 {offsets = [0, 0], sizes = [8, 32], strides = [1, 1]} : vector<8x96xf32> to vector<8x32xf32>
    %72 = vector.extract_strided_slice %68 {offsets = [0, 32], sizes = [8, 32], strides = [1, 1]} : vector<8x96xf32> to vector<8x32xf32>
    %73 = vector.extract_strided_slice %68 {offsets = [0, 64], sizes = [8, 32], strides = [1, 1]} : vector<8x96xf32> to vector<8x32xf32>
    %74 = arith.mulf %72, %59 : vector<8x32xf32>
    %75 = arith.mulf %71, %70 : vector<8x32xf32>
    %76 = arith.addf %74, %75 : vector<8x32xf32>
    %77 = math.tanh %76 : vector<8x32xf32>
    %78 = arith.mulf %73, %77 : vector<8x32xf32>
    %79 = arith.truncf %78 : vector<8x32xf32> to vector<8x32xbf16>
    %cst_24 = arith.constant dense<0.000000e+00> : vector<8x128xf32>
    %80 = tpu.matmul %79, %57, %cst_24 {dimension_numbers = #tpu.dot_dimension_numbers<[1], [0], [0], [1], [0, 0, 1, 1], [], []>} : vector<8x32xbf16>, vector<32x128xbf16>, vector<8x128xf32> -> vector<8x128xf32>
    %81 = arith.addf %55, %80 : vector<8x128xf32>
    %82 = vector.extract_strided_slice %81 {offsets = [0, 0], sizes = [8, 96], strides = [1, 1]} : vector<8x128xf32> to vector<8x96xf32>
    %83 = arith.negf %82 : vector<8x96xf32>
    %84 = math.exp %83 : vector<8x96xf32>
    %cst_25 = arith.constant 1.000000e+00 : f32
    %85 = vector.broadcast %cst_25 : f32 to vector<8x96xf32>
    %86 = arith.addf %85, %84 : vector<8x96xf32>
    %87 = arith.divf %85, %86 : vector<8x96xf32>
    %88 = vector.extract_strided_slice %81 {offsets = [0, 96], sizes = [8, 32], strides = [1, 1]} : vector<8x128xf32> to vector<8x32xf32>
    %89 = math.tanh %88 : vector<8x32xf32>
    %90 = vector.extract_strided_slice %87 {offsets = [0, 0], sizes = [8, 32], strides = [1, 1]} : vector<8x96xf32> to vector<8x32xf32>
    %91 = vector.extract_strided_slice %87 {offsets = [0, 32], sizes = [8, 32], strides = [1, 1]} : vector<8x96xf32> to vector<8x32xf32>
    %92 = vector.extract_strided_slice %87 {offsets = [0, 64], sizes = [8, 32], strides = [1, 1]} : vector<8x96xf32> to vector<8x32xf32>
    %93 = arith.mulf %91, %76 : vector<8x32xf32>
    %94 = arith.mulf %90, %89 : vector<8x32xf32>
    %95 = arith.addf %93, %94 : vector<8x32xf32>
    %96 = math.tanh %95 : vector<8x32xf32>
    %97 = arith.mulf %92, %96 : vector<8x32xf32>
    %98 = arith.truncf %30 : vector<8x32xf32> to vector<8x32xbf16>
    %99 = arith.truncf %49 : vector<8x32xf32> to vector<8x32xbf16>
    %100 = arith.truncf %97 : vector<8x32xf32> to vector<8x32xbf16>
    %101 = arith.truncf %78 : vector<8x32xf32> to vector<8x32xbf16>
    %c0_26 = arith.constant 0 : index
    %c0_27 = arith.constant 0 : index
    %102 = vector.load %arg7[%c0_26, %c0_27] : memref<64x128xbf16, #tpu.memory_space<vmem>>, vector<64x128xbf16>
    %103 = vector.extract_strided_slice %102 {offsets = [0, 0], sizes = [32, 128], strides = [1, 1]} : vector<64x128xbf16> to vector<32x128xbf16>
    %104 = vector.extract_strided_slice %102 {offsets = [32, 0], sizes = [32, 128], strides = [1, 1]} : vector<64x128xbf16> to vector<32x128xbf16>
    %c0_28 = arith.constant 0 : index
    %c0_29 = arith.constant 0 : index
    %105 = vector.load %arg9[%c0_28, %c0_29] : memref<1x128xf32, #tpu.memory_space<vmem>>, vector<1x128xf32>
    %cst_30 = arith.constant dense<0.000000e+00> : vector<8x128xf32>
    %106 = tpu.matmul %98, %103, %cst_30 {dimension_numbers = #tpu.dot_dimension_numbers<[1], [0], [0], [1], [0, 0, 1, 1], [], []>} : vector<8x32xbf16>, vector<32x128xbf16>, vector<8x128xf32> -> vector<8x128xf32>
    %cst_31 = arith.constant dense<0.000000e+00> : vector<8x128xf32>
    %107 = tpu.matmul %100, %104, %cst_31 {dimension_numbers = #tpu.dot_dimension_numbers<[1], [0], [0], [1], [0, 0, 1, 1], [], []>} : vector<8x32xbf16>, vector<32x128xbf16>, vector<8x128xf32> -> vector<8x128xf32>
    %108 = arith.addf %106, %107 : vector<8x128xf32>
    %109 = vector.broadcast %105 : vector<1x128xf32> to vector<8x128xf32>
    %110 = arith.addf %108, %109 : vector<8x128xf32>
    %cst_32 = arith.constant dense<0.000000e+00> : vector<8x128xf32>
    %111 = tpu.matmul %99, %103, %cst_32 {dimension_numbers = #tpu.dot_dimension_numbers<[1], [0], [0], [1], [0, 0, 1, 1], [], []>} : vector<8x32xbf16>, vector<32x128xbf16>, vector<8x128xf32> -> vector<8x128xf32>
    %cst_33 = arith.constant dense<0.000000e+00> : vector<8x128xf32>
    %112 = tpu.matmul %101, %104, %cst_33 {dimension_numbers = #tpu.dot_dimension_numbers<[1], [0], [0], [1], [0, 0, 1, 1], [], []>} : vector<8x32xbf16>, vector<32x128xbf16>, vector<8x128xf32> -> vector<8x128xf32>
    %113 = arith.addf %111, %112 : vector<8x128xf32>
    %114 = vector.broadcast %105 : vector<1x128xf32> to vector<8x128xf32>
    %115 = arith.addf %113, %114 : vector<8x128xf32>
    %c0_34 = arith.constant 0 : index
    %c0_35 = arith.constant 0 : index
    %116 = vector.load %arg8[%c0_34, %c0_35] : memref<32x128xbf16, #tpu.memory_space<vmem>>, vector<32x128xbf16>
    %cst_36 = arith.constant 0.000000e+00 : f32
    %117 = vector.broadcast %cst_36 : f32 to vector<8x32xf32>
    %cst_37 = arith.constant 0.000000e+00 : f32
    %118 = vector.broadcast %cst_37 : f32 to vector<8x32xf32>
    %119 = arith.truncf %117 : vector<8x32xf32> to vector<8x32xbf16>
    %cst_38 = arith.constant dense<0.000000e+00> : vector<8x128xf32>
    %120 = tpu.matmul %119, %116, %cst_38 {dimension_numbers = #tpu.dot_dimension_numbers<[1], [0], [0], [1], [0, 0, 1, 1], [], []>} : vector<8x32xbf16>, vector<32x128xbf16>, vector<8x128xf32> -> vector<8x128xf32>
    %121 = arith.addf %110, %120 : vector<8x128xf32>
    %122 = vector.extract_strided_slice %121 {offsets = [0, 0], sizes = [8, 96], strides = [1, 1]} : vector<8x128xf32> to vector<8x96xf32>
    %123 = arith.negf %122 : vector<8x96xf32>
    %124 = math.exp %123 : vector<8x96xf32>
    %cst_39 = arith.constant 1.000000e+00 : f32
    %125 = vector.broadcast %cst_39 : f32 to vector<8x96xf32>
    %126 = arith.addf %125, %124 : vector<8x96xf32>
    %127 = arith.divf %125, %126 : vector<8x96xf32>
    %128 = vector.extract_strided_slice %121 {offsets = [0, 96], sizes = [8, 32], strides = [1, 1]} : vector<8x128xf32> to vector<8x32xf32>
    %129 = math.tanh %128 : vector<8x32xf32>
    %130 = vector.extract_strided_slice %127 {offsets = [0, 0], sizes = [8, 32], strides = [1, 1]} : vector<8x96xf32> to vector<8x32xf32>
    %131 = vector.extract_strided_slice %127 {offsets = [0, 32], sizes = [8, 32], strides = [1, 1]} : vector<8x96xf32> to vector<8x32xf32>
    %132 = vector.extract_strided_slice %127 {offsets = [0, 64], sizes = [8, 32], strides = [1, 1]} : vector<8x96xf32> to vector<8x32xf32>
    %133 = arith.mulf %131, %118 : vector<8x32xf32>
    %134 = arith.mulf %130, %129 : vector<8x32xf32>
    %135 = arith.addf %133, %134 : vector<8x32xf32>
    %136 = math.tanh %135 : vector<8x32xf32>
    %137 = arith.mulf %132, %136 : vector<8x32xf32>
    %138 = arith.truncf %137 : vector<8x32xf32> to vector<8x32xbf16>
    %cst_40 = arith.constant dense<0.000000e+00> : vector<8x128xf32>
    %139 = tpu.matmul %138, %116, %cst_40 {dimension_numbers = #tpu.dot_dimension_numbers<[1], [0], [0], [1], [0, 0, 1, 1], [], []>} : vector<8x32xbf16>, vector<32x128xbf16>, vector<8x128xf32> -> vector<8x128xf32>
    %140 = arith.addf %115, %139 : vector<8x128xf32>
    %141 = vector.extract_strided_slice %140 {offsets = [0, 0], sizes = [8, 96], strides = [1, 1]} : vector<8x128xf32> to vector<8x96xf32>
    %142 = arith.negf %141 : vector<8x96xf32>
    %143 = math.exp %142 : vector<8x96xf32>
    %cst_41 = arith.constant 1.000000e+00 : f32
    %144 = vector.broadcast %cst_41 : f32 to vector<8x96xf32>
    %145 = arith.addf %144, %143 : vector<8x96xf32>
    %146 = arith.divf %144, %145 : vector<8x96xf32>
    %147 = vector.extract_strided_slice %140 {offsets = [0, 96], sizes = [8, 32], strides = [1, 1]} : vector<8x128xf32> to vector<8x32xf32>
    %148 = math.tanh %147 : vector<8x32xf32>
    %149 = vector.extract_strided_slice %146 {offsets = [0, 0], sizes = [8, 32], strides = [1, 1]} : vector<8x96xf32> to vector<8x32xf32>
    %150 = vector.extract_strided_slice %146 {offsets = [0, 32], sizes = [8, 32], strides = [1, 1]} : vector<8x96xf32> to vector<8x32xf32>
    %151 = vector.extract_strided_slice %146 {offsets = [0, 64], sizes = [8, 32], strides = [1, 1]} : vector<8x96xf32> to vector<8x32xf32>
    %152 = arith.mulf %150, %135 : vector<8x32xf32>
    %153 = arith.mulf %149, %148 : vector<8x32xf32>
    %154 = arith.addf %152, %153 : vector<8x32xf32>
    %155 = math.tanh %154 : vector<8x32xf32>
    %156 = arith.mulf %151, %155 : vector<8x32xf32>
    %c0_42 = arith.constant 0 : index
    %c0_43 = arith.constant 0 : index
    %157 = vector.load %arg10[%c0_42, %c0_43] : memref<64x128xbf16, #tpu.memory_space<vmem>>, vector<64x128xbf16>
    %158 = vector.extract_strided_slice %157 {offsets = [0, 0], sizes = [32, 128], strides = [1, 1]} : vector<64x128xbf16> to vector<32x128xbf16>
    %159 = vector.extract_strided_slice %157 {offsets = [32, 0], sizes = [32, 128], strides = [1, 1]} : vector<64x128xbf16> to vector<32x128xbf16>
    %c0_44 = arith.constant 0 : index
    %c0_45 = arith.constant 0 : index
    %160 = vector.load %arg12[%c0_44, %c0_45] : memref<1x128xf32, #tpu.memory_space<vmem>>, vector<1x128xf32>
    %cst_46 = arith.constant dense<0.000000e+00> : vector<8x128xf32>
    %161 = tpu.matmul %98, %158, %cst_46 {dimension_numbers = #tpu.dot_dimension_numbers<[1], [0], [0], [1], [0, 0, 1, 1], [], []>} : vector<8x32xbf16>, vector<32x128xbf16>, vector<8x128xf32> -> vector<8x128xf32>
    %cst_47 = arith.constant dense<0.000000e+00> : vector<8x128xf32>
    %162 = tpu.matmul %100, %159, %cst_47 {dimension_numbers = #tpu.dot_dimension_numbers<[1], [0], [0], [1], [0, 0, 1, 1], [], []>} : vector<8x32xbf16>, vector<32x128xbf16>, vector<8x128xf32> -> vector<8x128xf32>
    %163 = arith.addf %161, %162 : vector<8x128xf32>
    %164 = vector.broadcast %160 : vector<1x128xf32> to vector<8x128xf32>
    %165 = arith.addf %163, %164 : vector<8x128xf32>
    %cst_48 = arith.constant dense<0.000000e+00> : vector<8x128xf32>
    %166 = tpu.matmul %99, %158, %cst_48 {dimension_numbers = #tpu.dot_dimension_numbers<[1], [0], [0], [1], [0, 0, 1, 1], [], []>} : vector<8x32xbf16>, vector<32x128xbf16>, vector<8x128xf32> -> vector<8x128xf32>
    %cst_49 = arith.constant dense<0.000000e+00> : vector<8x128xf32>
    %167 = tpu.matmul %101, %159, %cst_49 {dimension_numbers = #tpu.dot_dimension_numbers<[1], [0], [0], [1], [0, 0, 1, 1], [], []>} : vector<8x32xbf16>, vector<32x128xbf16>, vector<8x128xf32> -> vector<8x128xf32>
    %168 = arith.addf %166, %167 : vector<8x128xf32>
    %169 = vector.broadcast %160 : vector<1x128xf32> to vector<8x128xf32>
    %170 = arith.addf %168, %169 : vector<8x128xf32>
    %c0_50 = arith.constant 0 : index
    %c0_51 = arith.constant 0 : index
    %171 = vector.load %arg11[%c0_50, %c0_51] : memref<32x128xbf16, #tpu.memory_space<vmem>>, vector<32x128xbf16>
    %cst_52 = arith.constant 0.000000e+00 : f32
    %172 = vector.broadcast %cst_52 : f32 to vector<8x32xf32>
    %cst_53 = arith.constant 0.000000e+00 : f32
    %173 = vector.broadcast %cst_53 : f32 to vector<8x32xf32>
    %174 = arith.truncf %172 : vector<8x32xf32> to vector<8x32xbf16>
    %cst_54 = arith.constant dense<0.000000e+00> : vector<8x128xf32>
    %175 = tpu.matmul %174, %171, %cst_54 {dimension_numbers = #tpu.dot_dimension_numbers<[1], [0], [0], [1], [0, 0, 1, 1], [], []>} : vector<8x32xbf16>, vector<32x128xbf16>, vector<8x128xf32> -> vector<8x128xf32>
    %176 = arith.addf %170, %175 : vector<8x128xf32>
    %177 = vector.extract_strided_slice %176 {offsets = [0, 0], sizes = [8, 96], strides = [1, 1]} : vector<8x128xf32> to vector<8x96xf32>
    %178 = arith.negf %177 : vector<8x96xf32>
    %179 = math.exp %178 : vector<8x96xf32>
    %cst_55 = arith.constant 1.000000e+00 : f32
    %180 = vector.broadcast %cst_55 : f32 to vector<8x96xf32>
    %181 = arith.addf %180, %179 : vector<8x96xf32>
    %182 = arith.divf %180, %181 : vector<8x96xf32>
    %183 = vector.extract_strided_slice %176 {offsets = [0, 96], sizes = [8, 32], strides = [1, 1]} : vector<8x128xf32> to vector<8x32xf32>
    %184 = math.tanh %183 : vector<8x32xf32>
    %185 = vector.extract_strided_slice %182 {offsets = [0, 0], sizes = [8, 32], strides = [1, 1]} : vector<8x96xf32> to vector<8x32xf32>
    %186 = vector.extract_strided_slice %182 {offsets = [0, 32], sizes = [8, 32], strides = [1, 1]} : vector<8x96xf32> to vector<8x32xf32>
    %187 = vector.extract_strided_slice %182 {offsets = [0, 64], sizes = [8, 32], strides = [1, 1]} : vector<8x96xf32> to vector<8x32xf32>
    %188 = arith.mulf %186, %173 : vector<8x32xf32>
    %189 = arith.mulf %185, %184 : vector<8x32xf32>
    %190 = arith.addf %188, %189 : vector<8x32xf32>
    %191 = math.tanh %190 : vector<8x32xf32>
    %192 = arith.mulf %187, %191 : vector<8x32xf32>
    %193 = arith.truncf %192 : vector<8x32xf32> to vector<8x32xbf16>
    %cst_56 = arith.constant dense<0.000000e+00> : vector<8x128xf32>
    %194 = tpu.matmul %193, %171, %cst_56 {dimension_numbers = #tpu.dot_dimension_numbers<[1], [0], [0], [1], [0, 0, 1, 1], [], []>} : vector<8x32xbf16>, vector<32x128xbf16>, vector<8x128xf32> -> vector<8x128xf32>
    %195 = arith.addf %165, %194 : vector<8x128xf32>
    %196 = vector.extract_strided_slice %195 {offsets = [0, 0], sizes = [8, 96], strides = [1, 1]} : vector<8x128xf32> to vector<8x96xf32>
    %197 = arith.negf %196 : vector<8x96xf32>
    %198 = math.exp %197 : vector<8x96xf32>
    %cst_57 = arith.constant 1.000000e+00 : f32
    %199 = vector.broadcast %cst_57 : f32 to vector<8x96xf32>
    %200 = arith.addf %199, %198 : vector<8x96xf32>
    %201 = arith.divf %199, %200 : vector<8x96xf32>
    %202 = vector.extract_strided_slice %195 {offsets = [0, 96], sizes = [8, 32], strides = [1, 1]} : vector<8x128xf32> to vector<8x32xf32>
    %203 = math.tanh %202 : vector<8x32xf32>
    %204 = vector.extract_strided_slice %201 {offsets = [0, 0], sizes = [8, 32], strides = [1, 1]} : vector<8x96xf32> to vector<8x32xf32>
    %205 = vector.extract_strided_slice %201 {offsets = [0, 32], sizes = [8, 32], strides = [1, 1]} : vector<8x96xf32> to vector<8x32xf32>
    %206 = vector.extract_strided_slice %201 {offsets = [0, 64], sizes = [8, 32], strides = [1, 1]} : vector<8x96xf32> to vector<8x32xf32>
    %207 = arith.mulf %205, %190 : vector<8x32xf32>
    %208 = arith.mulf %204, %203 : vector<8x32xf32>
    %209 = arith.addf %207, %208 : vector<8x32xf32>
    %210 = math.tanh %209 : vector<8x32xf32>
    %211 = arith.mulf %206, %210 : vector<8x32xf32>
    %c0_58 = arith.constant 0 : index
    %c0_59 = arith.constant 0 : index
    %c0_60 = arith.constant 0 : index
    %212 = vector.load %arg18[%c0_58, %c0_59, %c0_60] : memref<4x8x32xf32, #tpu.memory_space<vmem>>, vector<1x8x32xf32>
    %213 = vector.shape_cast %212 : vector<1x8x32xf32> to vector<8x32xf32>
    %214 = vector.shape_cast %49 : vector<8x32xf32> to vector<1x8x32xf32>
    tpu.vector_store %arg18[%c0_58, %c0_59, %c0_60], %214 {strides = array<i32>} : memref<4x8x32xf32, #tpu.memory_space<vmem>>, vector<1x8x32xf32>,
    %c1 = arith.constant 1 : index
    %c0_61 = arith.constant 0 : index
    %c0_62 = arith.constant 0 : index
    %215 = vector.load %arg18[%c1, %c0_61, %c0_62] : memref<4x8x32xf32, #tpu.memory_space<vmem>>, vector<1x8x32xf32>
    %216 = vector.shape_cast %215 : vector<1x8x32xf32> to vector<8x32xf32>
    %217 = vector.shape_cast %97 : vector<8x32xf32> to vector<1x8x32xf32>
    tpu.vector_store %arg18[%c1, %c0_61, %c0_62], %217 {strides = array<i32>} : memref<4x8x32xf32, #tpu.memory_space<vmem>>, vector<1x8x32xf32>,
    %c2 = arith.constant 2 : index
    %c0_63 = arith.constant 0 : index
    %c0_64 = arith.constant 0 : index
    %218 = vector.load %arg18[%c2, %c0_63, %c0_64] : memref<4x8x32xf32, #tpu.memory_space<vmem>>, vector<1x8x32xf32>
    %219 = vector.shape_cast %218 : vector<1x8x32xf32> to vector<8x32xf32>
    %220 = vector.shape_cast %156 : vector<8x32xf32> to vector<1x8x32xf32>
    tpu.vector_store %arg18[%c2, %c0_63, %c0_64], %220 {strides = array<i32>} : memref<4x8x32xf32, #tpu.memory_space<vmem>>, vector<1x8x32xf32>,
    %c3 = arith.constant 3 : index
    %c0_65 = arith.constant 0 : index
    %c0_66 = arith.constant 0 : index
    %221 = vector.load %arg18[%c3, %c0_65, %c0_66] : memref<4x8x32xf32, #tpu.memory_space<vmem>>, vector<1x8x32xf32>
    %222 = vector.shape_cast %221 : vector<1x8x32xf32> to vector<8x32xf32>
    %223 = vector.shape_cast %211 : vector<8x32xf32> to vector<1x8x32xf32>
    tpu.vector_store %arg18[%c3, %c0_65, %c0_66], %223 {strides = array<i32>} : memref<4x8x32xf32, #tpu.memory_space<vmem>>, vector<1x8x32xf32>,
    %c0_67 = arith.constant 0 : index
    %c0_68 = arith.constant 0 : index
    %c0_69 = arith.constant 0 : index
    %224 = vector.load %arg19[%c0_67, %c0_68, %c0_69] : memref<4x8x32xf32, #tpu.memory_space<vmem>>, vector<1x8x32xf32>
    %225 = vector.shape_cast %224 : vector<1x8x32xf32> to vector<8x32xf32>
    %226 = vector.shape_cast %47 : vector<8x32xf32> to vector<1x8x32xf32>
    tpu.vector_store %arg19[%c0_67, %c0_68, %c0_69], %226 {strides = array<i32>} : memref<4x8x32xf32, #tpu.memory_space<vmem>>, vector<1x8x32xf32>,
    %c1_70 = arith.constant 1 : index
    %c0_71 = arith.constant 0 : index
    %c0_72 = arith.constant 0 : index
    %227 = vector.load %arg19[%c1_70, %c0_71, %c0_72] : memref<4x8x32xf32, #tpu.memory_space<vmem>>, vector<1x8x32xf32>
    %228 = vector.shape_cast %227 : vector<1x8x32xf32> to vector<8x32xf32>
    %229 = vector.shape_cast %95 : vector<8x32xf32> to vector<1x8x32xf32>
    tpu.vector_store %arg19[%c1_70, %c0_71, %c0_72], %229 {strides = array<i32>} : memref<4x8x32xf32, #tpu.memory_space<vmem>>, vector<1x8x32xf32>,
    %c2_73 = arith.constant 2 : index
    %c0_74 = arith.constant 0 : index
    %c0_75 = arith.constant 0 : index
    %230 = vector.load %arg19[%c2_73, %c0_74, %c0_75] : memref<4x8x32xf32, #tpu.memory_space<vmem>>, vector<1x8x32xf32>
    %231 = vector.shape_cast %230 : vector<1x8x32xf32> to vector<8x32xf32>
    %232 = vector.shape_cast %154 : vector<8x32xf32> to vector<1x8x32xf32>
    tpu.vector_store %arg19[%c2_73, %c0_74, %c0_75], %232 {strides = array<i32>} : memref<4x8x32xf32, #tpu.memory_space<vmem>>, vector<1x8x32xf32>,
    %c3_76 = arith.constant 3 : index
    %c0_77 = arith.constant 0 : index
    %c0_78 = arith.constant 0 : index
    %233 = vector.load %arg19[%c3_76, %c0_77, %c0_78] : memref<4x8x32xf32, #tpu.memory_space<vmem>>, vector<1x8x32xf32>
    %234 = vector.shape_cast %233 : vector<1x8x32xf32> to vector<8x32xf32>
    %235 = vector.shape_cast %209 : vector<8x32xf32> to vector<1x8x32xf32>
    tpu.vector_store %arg19[%c3_76, %c0_77, %c0_78], %235 {strides = array<i32>} : memref<4x8x32xf32, #tpu.memory_space<vmem>>, vector<1x8x32xf32>,
    %c0_79 = arith.constant 0 : index
    %c0_80 = arith.constant 0 : index
    %236 = vector.load %arg13[%c0_79, %c0_80] : memref<8x64xf32, #tpu.memory_space<vmem>>, vector<8x64xf32>
    %c0_81 = arith.constant 0 : index
    %c0_82 = arith.constant 0 : index
    %237 = vector.load %arg14[%c0_81, %c0_82] : memref<8x64xf32, #tpu.memory_space<vmem>>, vector<8x64xf32>
    %c0_83 = arith.constant 0 : index
    %c0_84 = arith.constant 0 : index
    %238 = vector.load %arg15[%c0_83, %c0_84] : memref<8x64xf32, #tpu.memory_space<vmem>>, vector<8x64xf32>
    %239 = vector.extract_strided_slice %236 {offsets = [0, 0], sizes = [8, 32], strides = [1, 1]} : vector<8x64xf32> to vector<8x32xf32>
    %240 = vector.extract_strided_slice %236 {offsets = [0, 32], sizes = [8, 32], strides = [1, 1]} : vector<8x64xf32> to vector<8x32xf32>
    %241 = vector.extract_strided_slice %237 {offsets = [0, 0], sizes = [8, 32], strides = [1, 1]} : vector<8x64xf32> to vector<8x32xf32>
    %242 = vector.extract_strided_slice %237 {offsets = [0, 32], sizes = [8, 32], strides = [1, 1]} : vector<8x64xf32> to vector<8x32xf32>
    %243 = vector.extract_strided_slice %238 {offsets = [0, 0], sizes = [8, 32], strides = [1, 1]} : vector<8x64xf32> to vector<8x32xf32>
    %244 = vector.extract_strided_slice %238 {offsets = [0, 32], sizes = [8, 32], strides = [1, 1]} : vector<8x64xf32> to vector<8x32xf32>
    %cst_85 = arith.constant 0.000000e+00 : f32
    %245 = vector.broadcast %cst_85 : f32 to vector<8x32xf32>
    %246 = arith.addf %245, %137 : vector<8x32xf32>
    %247 = arith.addf %246, %156 : vector<8x32xf32>
    %cst_86 = arith.constant 5.000000e-01 : f32
    %248 = vector.broadcast %cst_86 : f32 to vector<8x32xf32>
    %249 = arith.mulf %247, %248 : vector<8x32xf32>
    %cst_87 = arith.constant 0.000000e+00 : f32
    %250 = vector.broadcast %cst_87 : f32 to vector<8x32xf32>
    %251 = arith.addf %250, %211 : vector<8x32xf32>
    %252 = arith.addf %251, %192 : vector<8x32xf32>
    %cst_88 = arith.constant 5.000000e-01 : f32
    %253 = vector.broadcast %cst_88 : f32 to vector<8x32xf32>
    %254 = arith.mulf %252, %253 : vector<8x32xf32>
    %255 = arith.subf %137, %249 : vector<8x32xf32>
    %256 = arith.mulf %255, %255 : vector<8x32xf32>
    %cst_89 = arith.constant 0.000000e+00 : f32
    %257 = vector.broadcast %cst_89 : f32 to vector<8x32xf32>
    %258 = arith.addf %257, %256 : vector<8x32xf32>
    %259 = arith.subf %156, %249 : vector<8x32xf32>
    %260 = arith.mulf %259, %259 : vector<8x32xf32>
    %261 = arith.addf %258, %260 : vector<8x32xf32>
    %cst_90 = arith.constant 5.000000e-01 : f32
    %262 = vector.broadcast %cst_90 : f32 to vector<8x32xf32>
    %263 = arith.mulf %261, %262 : vector<8x32xf32>
    %264 = arith.subf %211, %254 : vector<8x32xf32>
    %265 = arith.mulf %264, %264 : vector<8x32xf32>
    %cst_91 = arith.constant 0.000000e+00 : f32
    %266 = vector.broadcast %cst_91 : f32 to vector<8x32xf32>
    %267 = arith.addf %266, %265 : vector<8x32xf32>
    %268 = arith.subf %192, %254 : vector<8x32xf32>
    %269 = arith.mulf %268, %268 : vector<8x32xf32>
    %270 = arith.addf %267, %269 : vector<8x32xf32>
    %cst_92 = arith.constant 5.000000e-01 : f32
    %271 = vector.broadcast %cst_92 : f32 to vector<8x32xf32>
    %272 = arith.mulf %270, %271 : vector<8x32xf32>
    %cst_93 = arith.constant 9.99999974E-6 : f32
    %273 = vector.broadcast %cst_93 : f32 to vector<8x32xf32>
    %274 = arith.addf %263, %273 : vector<8x32xf32>
    %275 = math.rsqrt %274 : vector<8x32xf32>
    %276 = arith.mulf %239, %275 : vector<8x32xf32>
    %277 = arith.mulf %276, %243 : vector<8x32xf32>
    %cst_94 = arith.constant 9.99999974E-6 : f32
    %278 = vector.broadcast %cst_94 : f32 to vector<8x32xf32>
    %279 = arith.addf %272, %278 : vector<8x32xf32>
    %280 = math.rsqrt %279 : vector<8x32xf32>
    %281 = arith.mulf %240, %280 : vector<8x32xf32>
    %282 = arith.mulf %281, %244 : vector<8x32xf32>
    %283 = arith.mulf %241, %243 : vector<8x32xf32>
    %284 = arith.mulf %242, %244 : vector<8x32xf32>
    %285 = arith.addf %283, %284 : vector<8x32xf32>
    %cst_95 = arith.constant dense<0.000000e+00> : vector<8xf32>
    %286 = vector.multi_reduction <add>, %285, %cst_95 [1] : vector<8x32xf32> to vector<8xf32>
    %287 = vector.shape_cast %286 : vector<8xf32> to vector<8x1xf32>
    %cst_96 = arith.constant dense<0.000000e+00> : vector<1xf32>
    %288 = vector.multi_reduction <add>, %287, %cst_96 [0] : vector<8x1xf32> to vector<1xf32>
    %289 = vector.shape_cast %288 : vector<1xf32> to vector<1x1xf32>
    %c0_97 = arith.constant 0 : index
    %c0_98 = arith.constant 0 : index
    %290 = vector.load %arg16[%c0_97, %c0_98] : memref<1x1xf32, #tpu.memory_space<vmem>>, vector<1x1xf32>
    %291 = arith.addf %289, %290 : vector<1x1xf32>
    %292 = arith.subf %137, %249 : vector<8x32xf32>
    %293 = arith.mulf %292, %277 : vector<8x32xf32>
    %294 = arith.subf %211, %254 : vector<8x32xf32>
    %295 = arith.mulf %294, %282 : vector<8x32xf32>
    %296 = arith.addf %293, %295 : vector<8x32xf32>
    %cst_99 = arith.constant dense<0.000000e+00> : vector<8xf32>
    %297 = vector.multi_reduction <add>, %296, %cst_99 [1] : vector<8x32xf32> to vector<8xf32>
    %298 = vector.shape_cast %297 : vector<8xf32> to vector<8x1xf32>
    %cst_100 = arith.constant dense<0.000000e+00> : vector<1xf32>
    %299 = vector.multi_reduction <add>, %298, %cst_100 [0] : vector<8x1xf32> to vector<1xf32>
    %300 = vector.shape_cast %299 : vector<1xf32> to vector<1x1xf32>
    %301 = arith.subf %156, %249 : vector<8x32xf32>
    %302 = arith.mulf %301, %277 : vector<8x32xf32>
    %303 = arith.subf %192, %254 : vector<8x32xf32>
    %304 = arith.mulf %303, %282 : vector<8x32xf32>
    %305 = arith.addf %302, %304 : vector<8x32xf32>
    %cst_101 = arith.constant dense<0.000000e+00> : vector<8xf32>
    %306 = vector.multi_reduction <add>, %305, %cst_101 [1] : vector<8x32xf32> to vector<8xf32>
    %307 = vector.shape_cast %306 : vector<8xf32> to vector<8x1xf32>
    %cst_102 = arith.constant dense<0.000000e+00> : vector<1xf32>
    %308 = vector.multi_reduction <add>, %307, %cst_102 [0] : vector<8x1xf32> to vector<1xf32>
    %309 = vector.shape_cast %308 : vector<1xf32> to vector<1x1xf32>
    %310 = tpu.iota {dimensions = array<i32: 0>} : vector<2x1xi32>
    %cst_103 = arith.constant 0.000000e+00 : f32
    %311 = vector.broadcast %cst_103 : f32 to vector<2x1xf32>
    %c0_i32 = arith.constant 0 : i32
    %312 = vector.broadcast %c0_i32 : i32 to vector<2x1xi32>
    %313 = arith.cmpi eq, %310, %312 : vector<2x1xi32>
    %cst_104 = arith.constant 0.000000e+00 : f32
    %314 = vector.shape_cast %300 : vector<1x1xf32> to vector<1x1xf32>
    %315 = vector.broadcast %314 : vector<1x1xf32> to vector<2x1xf32>
    %316 = vector.broadcast %cst_104 : f32 to vector<2x1xf32>
    %317 = arith.select %313, %315, %316 : vector<2x1xi1>, vector<2x1xf32>
    %318 = arith.addf %311, %317 : vector<2x1xf32>
    %c1_i32 = arith.constant 1 : i32
    %319 = vector.broadcast %c1_i32 : i32 to vector<2x1xi32>
    %320 = arith.cmpi eq, %310, %319 : vector<2x1xi32>
    %cst_105 = arith.constant 0.000000e+00 : f32
    %321 = vector.shape_cast %309 : vector<1x1xf32> to vector<1x1xf32>
    %322 = vector.broadcast %321 : vector<1x1xf32> to vector<2x1xf32>
    %323 = vector.broadcast %cst_105 : f32 to vector<2x1xf32>
    %324 = arith.select %320, %322, %323 : vector<2x1xi1>, vector<2x1xf32>
    %325 = arith.addf %318, %324 : vector<2x1xf32>
    %326 = vector.broadcast %291 : vector<1x1xf32> to vector<2x1xf32>
    %327 = arith.addf %325, %326 : vector<2x1xf32>
    %328 = arith.negf %327 : vector<2x1xf32>
    %329 = math.exp %328 : vector<2x1xf32>
    %cst_106 = arith.constant 1.000000e+00 : f32
    %330 = vector.broadcast %cst_106 : f32 to vector<2x1xf32>
    %331 = arith.addf %330, %329 : vector<2x1xf32>
    %332 = arith.divf %330, %331 : vector<2x1xf32>
    %c0_107 = arith.constant 0 : index
    %c0_108 = arith.constant 0 : index
    %333 = vector.load %arg17[%c0_107, %c0_108] : memref<2x1xf32, #tpu.memory_space<vmem>>, vector<2x1xf32>
    tpu.vector_store %arg17[%c0_107, %c0_108], %332 {strides = array<i32>} : memref<2x1xf32, #tpu.memory_space<vmem>>, vector<2x1xf32>,
    return
  }
}

</mosaic_0001>

<llo_original>
// kernel: rnn_discriminator_forward.1
$region0: #{rnn_discriminator_forward.1}
  #allocation0 [shape = 'u32[]', space=smem, size = 0x4, offset = 0x4, fixed_abs, tag = 'smem constant byte address 0x4 - core index']
  #allocation1 [shape = 'u32[144,128]{1,0:T(1,128)}', space=vmem, size = 0x12000, scoped, tag = 'internal scratch']
  #allocation2 [shape = 'f32[1,1]{1,0:T(1,128)S(1)}', space=vmem, size = 0x200, scoped, tag = 'scoped memory for rnn_discriminator_forward.1']
  %s0 = inlined_call_operand.vmem [shape: f32[16,16], index: 0, kind: input, shape index: {}]
  %s1 = inlined_call_operand.vmem [shape: bf16[16,128], index: 1, kind: input, shape index: {}]
  %s2 = inlined_call_operand.vmem [shape: bf16[32,128], index: 2, kind: input, shape index: {}]
  %s3 = inlined_call_operand.vmem [shape: f32[1,128], index: 3, kind: input, shape index: {}]
  %s4 = inlined_call_operand.vmem [shape: bf16[16,128], index: 4, kind: input, shape index: {}]
  %s5 = inlined_call_operand.vmem [shape: bf16[32,128], index: 5, kind: input, shape index: {}]
  %s6 = inlined_call_operand.vmem [shape: f32[1,128], index: 6, kind: input, shape index: {}]
  %s7 = inlined_call_operand.vmem [shape: bf16[64,128], index: 7, kind: input, shape index: {}]
  %s8 = inlined_call_operand.vmem [shape: bf16[32,128], index: 8, kind: input, shape index: {}]
  %s9 = inlined_call_operand.vmem [shape: f32[1,128], index: 9, kind: input, shape index: {}]
  %s10 = inlined_call_operand.vmem [shape: bf16[64,128], index: 10, kind: input, shape index: {}]
  %s11 = inlined_call_operand.vmem [shape: bf16[32,128], index: 11, kind: input, shape index: {}]
  %s12 = inlined_call_operand.vmem [shape: f32[1,128], index: 12, kind: input, shape index: {}]
  %s13 = inlined_call_operand.vmem [shape: f32[8,64], index: 13, kind: input, shape index: {}]
  %s14 = inlined_call_operand.vmem [shape: f32[8,64], index: 14, kind: input, shape index: {}]
  %s15 = inlined_call_operand.vmem [shape: f32[8,64], index: 15, kind: input, shape index: {}]
  %s16 = inlined_call_operand.<no memory space> [shape: f32[1,1], index: 16, kind: input, shape index: {}]
  %s17 = inlined_call_operand.vmem [shape: f32[2,1], index: 17, kind: output, shape index: {0}]
  %s18 = inlined_call_operand.hbm [shape: f32[4,8,32], index: 18, kind: output, shape index: {1}]
  %s19 = inlined_call_operand.hbm [shape: f32[4,8,32], index: 19, kind: output, shape index: {2}]
  %20 = xla_tuple %s17, %s18, %s19
  %s21 = sld [smem:[#allocation0]]
  $region94: #{rnn_discriminator_forward.1} parent=0
    _
  %s23 = ssub.s32 1, %s21
  %s24 = scalar_select 0, %s23, %s21
  %v25 = vstv %s16
  %26 = vst [vmem:[#allocation2] sm:$0x1] %v25
  $region1: #{rnn_discriminator_forward.1} parent=0
    #allocation3 [shape = 'u8[16384]{0}', space=vmem, size = 0x4000, scoped, tag = 'output window, operand 1, single buffered']
    #allocation4 [shape = 's32[1]{0}', space=sflag, size = 0x4, scoped, tag = 'scoped memory for rnn_discriminator_forward.1']
    #allocation5 [shape = 'u8[16384]{0}', space=vmem, size = 0x4000, scoped, tag = 'output window, operand 2, single buffered']
    #allocation6 [shape = 's32[1]{0}', space=sflag, size = 0x4, scoped, tag = 'scoped memory for rnn_discriminator_forward.1']
    %27 = vsyncpa [#allocation4], 0
    %28 = vsyncpa [#allocation6], 0
    // Predicated region
    $region2: #{rnn_discriminator_forward.1} parent=1 // pred_check
      _
    $region3: #{rnn_discriminator_forward.1} parent=1 // pred_check_branch
      %30 = sbr.rel (0) target = $region5
    $region4: #{rnn_discriminator_forward.1} parent=1 // pred_region
      _
    $region5: #{rnn_discriminator_forward.1} parent=1 // pred_fallthru
      _
    // Predicated region
    $region6: #{rnn_discriminator_forward.1} parent=1 // pred_check
      _
    $region7: #{rnn_discriminator_forward.1} parent=1 // pred_check_branch
      %32 = sbr.rel (0) target = $region9
    $region8: #{rnn_discriminator_forward.1} parent=1 // pred_region
      _
    $region9: #{rnn_discriminator_forward.1} parent=1 // pred_fallthru
      _
    // Predicated region
    $region10: #{rnn_discriminator_forward.1} parent=1 // pred_check
      _
    $region11: #{rnn_discriminator_forward.1} parent=1 // pred_check_branch
      %34 = sbr.rel (0) target = $region13
    $region12: #{rnn_discriminator_forward.1} parent=1 // pred_region
      _
    $region13: #{rnn_discriminator_forward.1} parent=1 // pred_fallthru
      _
    // Predicated region
    $region14: #{rnn_discriminator_forward.1} parent=1 // pred_check
      _
    $region15: #{rnn_discriminator_forward.1} parent=1 // pred_check_branch
      %36 = sbr.rel (0) target = $region17
    $region16: #{rnn_discriminator_forward.1} parent=1 // pred_region
      _
    $region17: #{rnn_discriminator_forward.1} parent=1 // pred_fallthru
      _
    // Predicated region
    $region18: #{rnn_discriminator_forward.1} parent=1 // pred_check
      _
    $region19: #{rnn_discriminator_forward.1} parent=1 // pred_check_branch
      %38 = sbr.rel (0) target = $region21
    $region20: #{rnn_discriminator_forward.1} parent=1 // pred_region
      _
    $region21: #{rnn_discriminator_forward.1} parent=1 // pred_fallthru
      _
    // Predicated region
    $region22: #{rnn_discriminator_forward.1} parent=1 // pred_check
      _
    $region23: #{rnn_discriminator_forward.1} parent=1 // pred_check_branch
      %40 = sbr.rel (0) target = $region25
    $region24: #{rnn_discriminator_forward.1} parent=1 // pred_region
      _
    $region25: #{rnn_discriminator_forward.1} parent=1 // pred_fallthru
      _
    // Predicated region
    $region26: #{rnn_discriminator_forward.1} parent=1 // pred_check
      _
    $region27: #{rnn_discriminator_forward.1} parent=1 // pred_check_branch
      %42 = sbr.rel (0) target = $region29
    $region28: #{rnn_discriminator_forward.1} parent=1 // pred_region
      _
    $region29: #{rnn_discriminator_forward.1} parent=1 // pred_fallthru
      _
    // Predicated region
    $region30: #{rnn_discriminator_forward.1} parent=1 // pred_check
      _
    $region31: #{rnn_discriminator_forward.1} parent=1 // pred_check_branch
      %44 = sbr.rel (0) target = $region33
    $region32: #{rnn_discriminator_forward.1} parent=1 // pred_region
      _
    $region33: #{rnn_discriminator_forward.1} parent=1 // pred_fallthru
      _
    // Predicated region
    $region34: #{rnn_discriminator_forward.1} parent=1 // pred_check
      _
    $region35: #{rnn_discriminator_forward.1} parent=1 // pred_check_branch
      %46 = sbr.rel (0) target = $region37
    $region36: #{rnn_discriminator_forward.1} parent=1 // pred_region
      _
    $region37: #{rnn_discriminator_forward.1} parent=1 // pred_fallthru
      _
    // Predicated region
    $region38: #{rnn_discriminator_forward.1} parent=1 // pred_check
      _
    $region39: #{rnn_discriminator_forward.1} parent=1 // pred_check_branch
      %48 = sbr.rel (0) target = $region41
    $region40: #{rnn_discriminator_forward.1} parent=1 // pred_region
      _
    $region41: #{rnn_discriminator_forward.1} parent=1 // pred_fallthru
      _
    // Predicated region
    $region42: #{rnn_discriminator_forward.1} parent=1 // pred_check
      _
    $region43: #{rnn_discriminator_forward.1} parent=1 // pred_check_branch
      %50 = sbr.rel (0) target = $region45
    $region44: #{rnn_discriminator_forward.1} parent=1 // pred_region
      _
    $region45: #{rnn_discriminator_forward.1} parent=1 // pred_fallthru
      _
    // Predicated region
    $region46: #{rnn_discriminator_forward.1} parent=1 // pred_check
      _
    $region47: #{rnn_discriminator_forward.1} parent=1 // pred_check_branch
      %52 = sbr.rel (0) target = $region49
    $region48: #{rnn_discriminator_forward.1} parent=1 // pred_region
      _
    $region49: #{rnn_discriminator_forward.1} parent=1 // pred_fallthru
      _
    // Predicated region
    $region50: #{rnn_discriminator_forward.1} parent=1 // pred_check
      _
    $region51: #{rnn_discriminator_forward.1} parent=1 // pred_check_branch
      %54 = sbr.rel (0) target = $region53
    $region52: #{rnn_discriminator_forward.1} parent=1 // pred_region
      _
    $region53: #{rnn_discriminator_forward.1} parent=1 // pred_fallthru
      _
    // Predicated region
    $region54: #{rnn_discriminator_forward.1} parent=1 // pred_check
      _
    $region55: #{rnn_discriminator_forward.1} parent=1 // pred_check_branch
      %56 = sbr.rel (0) target = $region57
    $region56: #{rnn_discriminator_forward.1} parent=1 // pred_region
      _
    $region57: #{rnn_discriminator_forward.1} parent=1 // pred_fallthru
      _
    // Predicated region
    $region58: #{rnn_discriminator_forward.1} parent=1 // pred_check
      _
    $region59: #{rnn_discriminator_forward.1} parent=1 // pred_check_branch
      %58 = sbr.rel (0) target = $region61
    $region60: #{rnn_discriminator_forward.1} parent=1 // pred_region
      _
    $region61: #{rnn_discriminator_forward.1} parent=1 // pred_fallthru
      _
    // Predicated region
    $region62: #{rnn_discriminator_forward.1} parent=1 // pred_check
      _
    $region63: #{rnn_discriminator_forward.1} parent=1 // pred_check_branch
      %60 = sbr.rel (0) target = $region65
    $region64: #{rnn_discriminator_forward.1} parent=1 // pred_region
      _
    $region65: #{rnn_discriminator_forward.1} parent=1 // pred_fallthru
      _
    // Predicated region
    $region66: #{rnn_discriminator_forward.1} parent=1 // pred_check
      _
    $region67: #{rnn_discriminator_forward.1} parent=1 // pred_check_branch
      %62 = sbr.rel (0) target = $region69
    $region68: #{rnn_discriminator_forward.1} parent=1 // pred_region
      _
    $region69: #{rnn_discriminator_forward.1} parent=1 // pred_fallthru
      _
    %v64 = vld [vmem:[%s0] sm:$0xff]
    %v65 = vld [vmem:[%s0 + $0x8] sm:$0xff]
    %v66 = vpack.c.bf16 %v65, %v64
    %v67 = vld [vmem:[%s1] sm:$0xf]
    %v68 = vld [vmem:[%s1 + $0x4] sm:$0xf]
    %v69 = vld [vmem:[%s3] sm:$0x1]
    %v71 = vlaneseq
    %v72 = vshrl.u32 %v71, 7
    %v73 = vsub.s32 0, %v72
    %v74 = vrot.slane %v69, %v73
    %v78 = vunpack.c.l.b16 %v67
    %v79 = vunpack.c.l.b16 %v68
    %v80 = vpack.c.b16 %v79, %v78
    %vm82 = vcmask 130048
    %v84 = vsel %vm82, %v66, 0
    %86 = vmatprep.subr.bf16.mxu0 0
    %87 = vmatpush1.bf16.msra.mxu0 %v80
    %88 = vmatprep.subr.bf16.mxu0 0
    %89 = vmatpush1.bf16.msra.mxu0 0
    %90 = vmatprep.subr.bf16.mxu0 0
    %91 = vmatpush1.bf16.msra.mxu0 0
    %92 = vmatprep.subr.bf16.mxu0 0
    %93 = vmatpush1.bf16.msra.mxu0 0
    %94 = vmatprep.subr.bf16.mxu0 0
    %95 = vmatpush1.bf16.msra.mxu0 0
    %96 = vmatprep.subr.bf16.mxu0 0
    %97 = vmatpush1.bf16.msra.mxu0 0
    %98 = vmatprep.subr.bf16.mxu0 0
    %99 = vmatpush1.bf16.msra.mxu0 0
    %100 = vmatprep.subr.bf16.mxu0 0
    %101 = vmatpush1.bf16.msra.mxu0 0
    %102 = vmatprep.subr.bf16.mxu0 0
    %103 = vmatpush1.bf16.msra.mxu0 0
    %104 = vmatprep.subr.bf16.mxu0 0
    %105 = vmatpush1.bf16.msra.mxu0 0
    %106 = vmatprep.subr.bf16.mxu0 0
    %107 = vmatpush1.bf16.msra.mxu0 0
    %108 = vmatprep.subr.bf16.mxu0 0
    %109 = vmatpush1.bf16.msra.mxu0 0
    %110 = vmatprep.subr.bf16.mxu0 0
    %111 = vmatpush1.bf16.msra.mxu0 0
    %112 = vmatprep.subr.bf16.mxu0 0
    %113 = vmatpush1.bf16.msra.mxu0 0
    %114 = vmatprep.subr.bf16.mxu0 0
    %115 = vmatpush1.bf16.msra.mxu0 0
    %116 = vmatprep.subr.bf16.mxu0 0
    %117 = vmatpush1.bf16.msra.mxu0 0
    %118 = vmatprep.mubr.bf16.mxu0 0
    %119 = vmatmul.mubr.bf16.gmra.mrb[0].mxu0 %v84
    %v120 = vpop.f32.mrb[0].mxu0
    %v121 = vadd.f32 %v74, %v120
    %v122 = vpop.f32.mrb[0].mxu0
    %v123 = vpop.f32.mrb[0].mxu0
    %v124 = vadd.f32 %v74, %v123
    %v125 = vpop.f32.mrb[0].mxu0
    %126 = vdwg.mxu0
    %v127 = vld [vmem:[%s2] sm:$0xf]
    %v128 = vld [vmem:[%s2 + $0x4] sm:$0xf]
    %v129 = vld [vmem:[%s2 + $0x8] sm:$0xf]
    %v130 = vld [vmem:[%s2 + $0xc] sm:$0xf]
    %v135 = vunpack.c.l.b16 %v127
    %v136 = vunpack.c.l.b16 %v128
    %v137 = vunpack.c.l.b16 %v129
    %v138 = vunpack.c.l.b16 %v130
    %v139 = vpack.c.b16 %v136, %v135
    %v140 = vpack.c.b16 %v138, %v137
    %vm143 = vcmask 261120
    %v145 = vsel %vm143, 0, 0
    %147 = vmatprep.subr.bf16.mxu0 0
    %148 = vmatpush1.bf16.msra.mxu0 %v139
    %149 = vmatprep.subr.bf16.mxu0 0
    %150 = vmatpush1.bf16.msra.mxu0 %v140
    %151 = vmatprep.subr.bf16.mxu0 0
    %152 = vmatpush1.bf16.msra.mxu0 0
    %153 = vmatprep.subr.bf16.mxu0 0
    %154 = vmatpush1.bf16.msra.mxu0 0
    %155 = vmatprep.subr.bf16.mxu0 0
    %156 = vmatpush1.bf16.msra.mxu0 0
    %157 = vmatprep.subr.bf16.mxu0 0
    %158 = vmatpush1.bf16.msra.mxu0 0
    %159 = vmatprep.subr.bf16.mxu0 0
    %160 = vmatpush1.bf16.msra.mxu0 0
    %161 = vmatprep.subr.bf16.mxu0 0
    %162 = vmatpush1.bf16.msra.mxu0 0
    %163 = vmatprep.subr.bf16.mxu0 0
    %164 = vmatpush1.bf16.msra.mxu0 0
    %165 = vmatprep.subr.bf16.mxu0 0
    %166 = vmatpush1.bf16.msra.mxu0 0
    %167 = vmatprep.subr.bf16.mxu0 0
    %168 = vmatpush1.bf16.msra.mxu0 0
    %169 = vmatprep.subr.bf16.mxu0 0
    %170 = vmatpush1.bf16.msra.mxu0 0
    %171 = vmatprep.subr.bf16.mxu0 0
    %172 = vmatpush1.bf16.msra.mxu0 0
    %173 = vmatprep.subr.bf16.mxu0 0
    %174 = vmatpush1.bf16.msra.mxu0 0
    %175 = vmatprep.subr.bf16.mxu0 0
    %176 = vmatpush1.bf16.msra.mxu0 0
    %177 = vmatprep.subr.bf16.mxu0 0
    %178 = vmatpush1.bf16.msra.mxu0 0
    %179 = vmatprep.mubr.bf16.mxu0 0
    %180 = vmatmul.mubr.bf16.gmra.mrb[0].mxu0 %v145
    %v181 = vpop.f32.mrb[0].mxu0
    %v182 = vadd.f32 0.0, %v181
    %v183 = vpop.f32.mrb[0].mxu0
    %v184 = vpop.f32.mrb[0].mxu0
    %v185 = vpop.f32.mrb[0].mxu0
    %186 = vdwg.mxu0
    %v187 = vadd.f32 %v121, %v182
    %v188 = vxor.u32 %v187, 2147483648
    %v189 = vmul.f32 %v188, 1.442695
    %v190 = vpow.pop %v189
    %v191 = vadd.f32 %v190, 1.0
    %v192 = vrcp.pop %v191
    %v193 = vmul.f32 1.0, %v192
    %v194 = vtanh.pop %v187
    %v195 = vmul.f32 %v193, 0.0
    %197 = vrot.lane.b32.xlu0 %v194, 32
    %v198 = vpop.permute.xlu0 %197
    %v200 = vmul.f32 %v193, %v198
    %202 = vrot.lane.b32.xlu0 %v200, 32
    %v203 = vpop.permute.xlu0 %202
    %v205 = vadd.f32 %v195, %v203
    %v206 = vtanh.pop %v205
    %208 = vrot.lane.b32.xlu0 %v206, 32
    %v209 = vpop.permute.xlu0 %208
    %v211 = vmul.f32 %v193, %v209
    %v212 = vpack.c.bf16 %v211, %v211
    %214 = vrot.lane.b32.xlu0 %v212, 64
    %v215 = vpop.permute.xlu0 %214
    %v217 = vsel %vm143, %v215, 0
    %219 = vmatprep.subr.bf16.mxu0 0
    %220 = vmatpush1.bf16.msra.mxu0 %v139
    %221 = vmatprep.subr.bf16.mxu0 0
    %222 = vmatpush1.bf16.msra.mxu0 %v140
    %223 = vmatprep.subr.bf16.mxu0 0
    %224 = vmatpush1.bf16.msra.mxu0 0
    %225 = vmatprep.subr.bf16.mxu0 0
    %226 = vmatpush1.bf16.msra.mxu0 0
    %227 = vmatprep.subr.bf16.mxu0 0
    %228 = vmatpush1.bf16.msra.mxu0 0
    %229 = vmatprep.subr.bf16.mxu0 0
    %230 = vmatpush1.bf16.msra.mxu0 0
    %231 = vmatprep.subr.bf16.mxu0 0
    %232 = vmatpush1.bf16.msra.mxu0 0
    %233 = vmatprep.subr.bf16.mxu0 0
    %234 = vmatpush1.bf16.msra.mxu0 0
    %235 = vmatprep.subr.bf16.mxu0 0
    %236 = vmatpush1.bf16.msra.mxu0 0
    %237 = vmatprep.subr.bf16.mxu0 0
    %238 = vmatpush1.bf16.msra.mxu0 0
    %239 = vmatprep.subr.bf16.mxu0 0
    %240 = vmatpush1.bf16.msra.mxu0 0
    %241 = vmatprep.subr.bf16.mxu0 0
    %242 = vmatpush1.bf16.msra.mxu0 0
    %243 = vmatprep.subr.bf16.mxu0 0
    %244 = vmatpush1.bf16.msra.mxu0 0
    %245 = vmatprep.subr.bf16.mxu0 0
    %246 = vmatpush1.bf16.msra.mxu0 0
    %247 = vmatprep.subr.bf16.mxu0 0
    %248 = vmatpush1.bf16.msra.mxu0 0
    %249 = vmatprep.subr.bf16.mxu0 0
    %250 = vmatpush1.bf16.msra.mxu0 0
    %251 = vmatprep.mubr.bf16.mxu0 0
    %252 = vmatmul.mubr.bf16.gmra.mrb[0].mxu0 %v217
    %v253 = vpop.f32.mrb[0].mxu0
    %v254 = vadd.f32 0.0, %v253
    %v255 = vpop.f32.mrb[0].mxu0
    %v256 = vpop.f32.mrb[0].mxu0
    %v257 = vpop.f32.mrb[0].mxu0
    %258 = vdwg.mxu0
    %v259 = vadd.f32 %v124, %v254
    %v260 = vxor.u32 %v259, 2147483648
    %v261 = vmul.f32 %v260, 1.442695
    %v262 = vpow.pop %v261
    %v263 = vadd.f32 %v262, 1.0
    %v264 = vrcp.pop %v263
    %v265 = vmul.f32 1.0, %v264
    %v266 = vtanh.pop %v259
    %v267 = vmul.f32 %v265, %v205
    %269 = vrot.lane.b32.xlu0 %v266, 32
    %v270 = vpop.permute.xlu0 %269
    %v272 = vmul.f32 %v265, %v270
    %274 = vrot.lane.b32.xlu0 %v272, 32
    %v275 = vpop.permute.xlu0 %274
    %v277 = vadd.f32 %v267, %v275
    %v278 = vtanh.pop %v277
    %280 = vrot.lane.b32.xlu0 %v278, 32
    %v281 = vpop.permute.xlu0 %280
    %v283 = vmul.f32 %v265, %v281
    %v284 = vld [vmem:[%s4] sm:$0xf]
    %v285 = vld [vmem:[%s4 + $0x4] sm:$0xf]
    %v286 = vld [vmem:[%s6] sm:$0x1]
    %v288 = vlaneseq
    %v289 = vshrl.u32 %v288, 7
    %v290 = vsub.s32 0, %v289
    %v291 = vrot.slane %v286, %v290
    %v295 = vunpack.c.l.b16 %v284
    %v296 = vunpack.c.l.b16 %v285
    %v297 = vpack.c.b16 %v296, %v295
    %299 = vmatprep.subr.bf16.mxu0 0
    %300 = vmatpush1.bf16.msra.mxu0 %v297
    %301 = vmatprep.subr.bf16.mxu0 0
    %302 = vmatpush1.bf16.msra.mxu0 0
    %303 = vmatprep.subr.bf16.mxu0 0
    %304 = vmatpush1.bf16.msra.mxu0 0
    %305 = vmatprep.subr.bf16.mxu0 0
    %306 = vmatpush1.bf16.msra.mxu0 0
    %307 = vmatprep.subr.bf16.mxu0 0
    %308 = vmatpush1.bf16.msra.mxu0 0
    %309 = vmatprep.subr.bf16.mxu0 0
    %310 = vmatpush1.bf16.msra.mxu0 0
    %311 = vmatprep.subr.bf16.mxu0 0
    %312 = vmatpush1.bf16.msra.mxu0 0
    %313 = vmatprep.subr.bf16.mxu0 0
    %314 = vmatpush1.bf16.msra.mxu0 0
    %315 = vmatprep.subr.bf16.mxu0 0
    %316 = vmatpush1.bf16.msra.mxu0 0
    %317 = vmatprep.subr.bf16.mxu0 0
    %318 = vmatpush1.bf16.msra.mxu0 0
    %319 = vmatprep.subr.bf16.mxu0 0
    %320 = vmatpush1.bf16.msra.mxu0 0
    %321 = vmatprep.subr.bf16.mxu0 0
    %322 = vmatpush1.bf16.msra.mxu0 0
    %323 = vmatprep.subr.bf16.mxu0 0
    %324 = vmatpush1.bf16.msra.mxu0 0
    %325 = vmatprep.subr.bf16.mxu0 0
    %326 = vmatpush1.bf16.msra.mxu0 0
    %327 = vmatprep.subr.bf16.mxu0 0
    %328 = vmatpush1.bf16.msra.mxu0 0
    %329 = vmatprep.subr.bf16.mxu0 0
    %330 = vmatpush1.bf16.msra.mxu0 0
    %331 = vmatprep.mubr.bf16.mxu0 0
    %332 = vmatmul.mubr.bf16.gmra.mrb[0].mxu0 %v84
    %v333 = vpop.f32.mrb[0].mxu0
    %v334 = vadd.f32 %v291, %v333
    %v335 = vpop.f32.mrb[0].mxu0
    %v336 = vpop.f32.mrb[0].mxu0
    %v337 = vadd.f32 %v291, %v336
    %v338 = vpop.f32.mrb[0].mxu0
    %339 = vdwg.mxu0
    %v340 = vld [vmem:[%s5] sm:$0xf]
    %v341 = vld [vmem:[%s5 + $0x4] sm:$0xf]
    %v342 = vld [vmem:[%s5 + $0x8] sm:$0xf]
    %v343 = vld [vmem:[%s5 + $0xc] sm:$0xf]
    %v348 = vunpack.c.l.b16 %v340
    %v349 = vunpack.c.l.b16 %v341
    %v350 = vunpack.c.l.b16 %v342
    %v351 = vunpack.c.l.b16 %v343
    %v352 = vpack.c.b16 %v349, %v348
    %v353 = vpack.c.b16 %v351, %v350
    %356 = vmatprep.subr.bf16.mxu0 0
    %357 = vmatpush1.bf16.msra.mxu0 %v352
    %358 = vmatprep.subr.bf16.mxu0 0
    %359 = vmatpush1.bf16.msra.mxu0 %v353
    %360 = vmatprep.subr.bf16.mxu0 0
    %361 = vmatpush1.bf16.msra.mxu0 0
    %362 = vmatprep.subr.bf16.mxu0 0
    %363 = vmatpush1.bf16.msra.mxu0 0
    %364 = vmatprep.subr.bf16.mxu0 0
    %365 = vmatpush1.bf16.msra.mxu0 0
    %366 = vmatprep.subr.bf16.mxu0 0
    %367 = vmatpush1.bf16.msra.mxu0 0
    %368 = vmatprep.subr.bf16.mxu0 0
    %369 = vmatpush1.bf16.msra.mxu0 0
    %370 = vmatprep.subr.bf16.mxu0 0
    %371 = vmatpush1.bf16.msra.mxu0 0
    %372 = vmatprep.subr.bf16.mxu0 0
    %373 = vmatpush1.bf16.msra.mxu0 0
    %374 = vmatprep.subr.bf16.mxu0 0
    %375 = vmatpush1.bf16.msra.mxu0 0
    %376 = vmatprep.subr.bf16.mxu0 0
    %377 = vmatpush1.bf16.msra.mxu0 0
    %378 = vmatprep.subr.bf16.mxu0 0
    %379 = vmatpush1.bf16.msra.mxu0 0
    %380 = vmatprep.subr.bf16.mxu0 0
    %381 = vmatpush1.bf16.msra.mxu0 0
    %382 = vmatprep.subr.bf16.mxu0 0
    %383 = vmatpush1.bf16.msra.mxu0 0
    %384 = vmatprep.subr.bf16.mxu0 0
    %385 = vmatpush1.bf16.msra.mxu0 0
    %386 = vmatprep.subr.bf16.mxu0 0
    %387 = vmatpush1.bf16.msra.mxu0 0
    %388 = vmatprep.mubr.bf16.mxu0 0
    %389 = vmatmul.mubr.bf16.gmra.mrb[0].mxu0 %v145
    %v390 = vpop.f32.mrb[0].mxu0
    %v391 = vadd.f32 0.0, %v390
    %v392 = vpop.f32.mrb[0].mxu0
    %v393 = vpop.f32.mrb[0].mxu0
    %v394 = vpop.f32.mrb[0].mxu0
    %395 = vdwg.mxu0
    %v396 = vadd.f32 %v337, %v391
    %v397 = vxor.u32 %v396, 2147483648
    %v398 = vmul.f32 %v397, 1.442695
    %v399 = vpow.pop %v398
    %v400 = vadd.f32 %v399, 1.0
    %v401 = vrcp.pop %v400
    %v402 = vmul.f32 1.0, %v401
    %v403 = vtanh.pop %v396
    %v404 = vmul.f32 %v402, 0.0
    %406 = vrot.lane.b32.xlu0 %v403, 32
    %v407 = vpop.permute.xlu0 %406
    %v409 = vmul.f32 %v402, %v407
    %411 = vrot.lane.b32.xlu0 %v409, 32
    %v412 = vpop.permute.xlu0 %411
    %v414 = vadd.f32 %v404, %v412
    %v415 = vtanh.pop %v414
    %417 = vrot.lane.b32.xlu0 %v415, 32
    %v418 = vpop.permute.xlu0 %417
    %v420 = vmul.f32 %v402, %v418
    %v421 = vpack.c.bf16 %v420, %v420
    %423 = vrot.lane.b32.xlu0 %v421, 64
    %v424 = vpop.permute.xlu0 %423
    %v426 = vsel %vm143, %v424, 0
    %428 = vmatprep.subr.bf16.mxu0 0
    %429 = vmatpush1.bf16.msra.mxu0 %v352
    %430 = vmatprep.subr.bf16.mxu0 0
    %431 = vmatpush1.bf16.msra.mxu0 %v353
    %432 = vmatprep.subr.bf16.mxu0 0
    %433 = vmatpush1.bf16.msra.mxu0 0
    %434 = vmatprep.subr.bf16.mxu0 0
    %435 = vmatpush1.bf16.msra.mxu0 0
    %436 = vmatprep.subr.bf16.mxu0 0
    %437 = vmatpush1.bf16.msra.mxu0 0
    %438 = vmatprep.subr.bf16.mxu0 0
    %439 = vmatpush1.bf16.msra.mxu0 0
    %440 = vmatprep.subr.bf16.mxu0 0
    %441 = vmatpush1.bf16.msra.mxu0 0
    %442 = vmatprep.subr.bf16.mxu0 0
    %443 = vmatpush1.bf16.msra.mxu0 0
    %444 = vmatprep.subr.bf16.mxu0 0
    %445 = vmatpush1.bf16.msra.mxu0 0
    %446 = vmatprep.subr.bf16.mxu0 0
    %447 = vmatpush1.bf16.msra.mxu0 0
    %448 = vmatprep.subr.bf16.mxu0 0
    %449 = vmatpush1.bf16.msra.mxu0 0
    %450 = vmatprep.subr.bf16.mxu0 0
    %451 = vmatpush1.bf16.msra.mxu0 0
    %452 = vmatprep.subr.bf16.mxu0 0
    %453 = vmatpush1.bf16.msra.mxu0 0
    %454 = vmatprep.subr.bf16.mxu0 0
    %455 = vmatpush1.bf16.msra.mxu0 0
    %456 = vmatprep.subr.bf16.mxu0 0
    %457 = vmatpush1.bf16.msra.mxu0 0
    %458 = vmatprep.subr.bf16.mxu0 0
    %459 = vmatpush1.bf16.msra.mxu0 0
    %460 = vmatprep.mubr.bf16.mxu0 0
    %461 = vmatmul.mubr.bf16.gmra.mrb[0].mxu0 %v426
    %v462 = vpop.f32.mrb[0].mxu0
    %v463 = vadd.f32 0.0, %v462
    %v464 = vpop.f32.mrb[0].mxu0
    %v465 = vpop.f32.mrb[0].mxu0
    %v466 = vpop.f32.mrb[0].mxu0
    %467 = vdwg.mxu0
    %v468 = vadd.f32 %v334, %v463
    %v469 = vxor.u32 %v468, 2147483648
    %v470 = vmul.f32 %v469, 1.442695
    %v471 = vpow.pop %v470
    %v472 = vadd.f32 %v471, 1.0
    %v473 = vrcp.pop %v472
    %v474 = vmul.f32 1.0, %v473
    %v475 = vtanh.pop %v468
    %v476 = vmul.f32 %v474, %v414
    %478 = vrot.lane.b32.xlu0 %v475, 32
    %v479 = vpop.permute.xlu0 %478
    %v481 = vmul.f32 %v474, %v479
    %483 = vrot.lane.b32.xlu0 %v481, 32
    %v484 = vpop.permute.xlu0 %483
    %v486 = vadd.f32 %v476, %v484
    %v487 = vtanh.pop %v486
    %489 = vrot.lane.b32.xlu0 %v487, 32
    %v490 = vpop.permute.xlu0 %489
    %v492 = vmul.f32 %v474, %v490
    %v493 = vpack.c.bf16 %v283, %v283
    %v494 = vpack.c.bf16 %v492, %v492
    %v495 = vld [vmem:[%s7] sm:$0xf]
    %v496 = vld [vmem:[%s7 + $0x4] sm:$0xf]
    %v497 = vld [vmem:[%s7 + $0x8] sm:$0xf]
    %v498 = vld [vmem:[%s7 + $0xc] sm:$0xf]
    %v499 = vld [vmem:[%s7 + $0x10] sm:$0xf]
    %v500 = vld [vmem:[%s7 + $0x14] sm:$0xf]
    %v501 = vld [vmem:[%s7 + $0x18] sm:$0xf]
    %v502 = vld [vmem:[%s7 + $0x1c] sm:$0xf]
    %v503 = vld [vmem:[%s9] sm:$0x1]
    %505 = vrot.lane.b32.xlu0 %v494, 64
    %v506 = vpop.permute.xlu0 %505
    %v511 = vunpack.c.l.b16 %v499
    %v512 = vunpack.c.l.b16 %v500
    %v513 = vunpack.c.l.b16 %v501
    %v514 = vunpack.c.l.b16 %v502
    %v515 = vpack.c.b16 %v512, %v511
    %v516 = vpack.c.b16 %v514, %v513
    %v520 = vsel %vm143, %v506, 0
    %522 = vmatprep.subr.bf16.mxu0 0
    %523 = vmatpush1.bf16.msra.mxu0 %v515
    %524 = vmatprep.subr.bf16.mxu0 0
    %525 = vmatpush1.bf16.msra.mxu0 %v516
    %526 = vmatprep.subr.bf16.mxu0 0
    %527 = vmatpush1.bf16.msra.mxu0 0
    %528 = vmatprep.subr.bf16.mxu0 0
    %529 = vmatpush1.bf16.msra.mxu0 0
    %530 = vmatprep.subr.bf16.mxu0 0
    %531 = vmatpush1.bf16.msra.mxu0 0
    %532 = vmatprep.subr.bf16.mxu0 0
    %533 = vmatpush1.bf16.msra.mxu0 0
    %534 = vmatprep.subr.bf16.mxu0 0
    %535 = vmatpush1.bf16.msra.mxu0 0
    %536 = vmatprep.subr.bf16.mxu0 0
    %537 = vmatpush1.bf16.msra.mxu0 0
    %538 = vmatprep.subr.bf16.mxu0 0
    %539 = vmatpush1.bf16.msra.mxu0 0
    %540 = vmatprep.subr.bf16.mxu0 0
    %541 = vmatpush1.bf16.msra.mxu0 0
    %542 = vmatprep.subr.bf16.mxu0 0
    %543 = vmatpush1.bf16.msra.mxu0 0
    %544 = vmatprep.subr.bf16.mxu0 0
    %545 = vmatpush1.bf16.msra.mxu0 0
    %546 = vmatprep.subr.bf16.mxu0 0
    %547 = vmatpush1.bf16.msra.mxu0 0
    %548 = vmatprep.subr.bf16.mxu0 0
    %549 = vmatpush1.bf16.msra.mxu0 0
    %550 = vmatprep.subr.bf16.mxu0 0
    %551 = vmatpush1.bf16.msra.mxu0 0
    %552 = vmatprep.subr.bf16.mxu0 0
    %553 = vmatpush1.bf16.msra.mxu0 0
    %554 = vmatprep.mubr.bf16.mxu0 0
    %555 = vmatmul.mubr.bf16.gmra.mrb[0].mxu0 %v520
    %v556 = vpop.f32.mrb[0].mxu0
    %v557 = vadd.f32 0.0, %v556
    %v558 = vpop.f32.mrb[0].mxu0
    %v559 = vpop.f32.mrb[0].mxu0
    %v560 = vpop.f32.mrb[0].mxu0
    %561 = vdwg.mxu0
    %v566 = vunpack.c.l.b16 %v495
    %v567 = vunpack.c.l.b16 %v496
    %v568 = vunpack.c.l.b16 %v497
    %v569 = vunpack.c.l.b16 %v498
    %v570 = vpack.c.b16 %v567, %v566
    %v571 = vpack.c.b16 %v569, %v568
    %574 = vmatprep.subr.bf16.mxu0 0
    %575 = vmatpush1.bf16.msra.mxu0 %v570
    %576 = vmatprep.subr.bf16.mxu0 0
    %577 = vmatpush1.bf16.msra.mxu0 %v571
    %578 = vmatprep.subr.bf16.mxu0 0
    %579 = vmatpush1.bf16.msra.mxu0 0
    %580 = vmatprep.subr.bf16.mxu0 0
    %581 = vmatpush1.bf16.msra.mxu0 0
    %582 = vmatprep.subr.bf16.mxu0 0
    %583 = vmatpush1.bf16.msra.mxu0 0
    %584 = vmatprep.subr.bf16.mxu0 0
    %585 = vmatpush1.bf16.msra.mxu0 0
    %586 = vmatprep.subr.bf16.mxu0 0
    %587 = vmatpush1.bf16.msra.mxu0 0
    %588 = vmatprep.subr.bf16.mxu0 0
    %589 = vmatpush1.bf16.msra.mxu0 0
    %590 = vmatprep.subr.bf16.mxu0 0
    %591 = vmatpush1.bf16.msra.mxu0 0
    %592 = vmatprep.subr.bf16.mxu0 0
    %593 = vmatpush1.bf16.msra.mxu0 0
    %594 = vmatprep.subr.bf16.mxu0 0
    %595 = vmatpush1.bf16.msra.mxu0 0
    %596 = vmatprep.subr.bf16.mxu0 0
    %597 = vmatpush1.bf16.msra.mxu0 0
    %598 = vmatprep.subr.bf16.mxu0 0
    %599 = vmatpush1.bf16.msra.mxu0 0
    %600 = vmatprep.subr.bf16.mxu0 0
    %601 = vmatpush1.bf16.msra.mxu0 0
    %602 = vmatprep.subr.bf16.mxu0 0
    %603 = vmatpush1.bf16.msra.mxu0 0
    %604 = vmatprep.subr.bf16.mxu0 0
    %605 = vmatpush1.bf16.msra.mxu0 0
    %606 = vmatprep.mubr.bf16.mxu0 0
    %607 = vmatmul.mubr.bf16.gmra.mrb[0].mxu0 %v217
    %v608 = vpop.f32.mrb[0].mxu0
    %v609 = vadd.f32 %v557, %v608
    %v610 = vpop.f32.mrb[0].mxu0
    %v611 = vpop.f32.mrb[0].mxu0
    %v612 = vpop.f32.mrb[0].mxu0
    %613 = vdwg.mxu0
    %v615 = vlaneseq
    %v616 = vshrl.u32 %v615, 7
    %v617 = vsub.s32 0, %v616
    %v618 = vrot.slane %v503, %v617
    %v620 = vadd.f32 %v609, %v618
    %621 = vmatprep.subr.bf16.mxu0 0
    %622 = vmatpush1.bf16.msra.mxu0 %v515
    %623 = vmatprep.subr.bf16.mxu0 0
    %624 = vmatpush1.bf16.msra.mxu0 %v516
    %625 = vmatprep.subr.bf16.mxu0 0
    %626 = vmatpush1.bf16.msra.mxu0 0
    %627 = vmatprep.subr.bf16.mxu0 0
    %628 = vmatpush1.bf16.msra.mxu0 0
    %629 = vmatprep.subr.bf16.mxu0 0
    %630 = vmatpush1.bf16.msra.mxu0 0
    %631 = vmatprep.subr.bf16.mxu0 0
    %632 = vmatpush1.bf16.msra.mxu0 0
    %633 = vmatprep.subr.bf16.mxu0 0
    %634 = vmatpush1.bf16.msra.mxu0 0
    %635 = vmatprep.subr.bf16.mxu0 0
    %636 = vmatpush1.bf16.msra.mxu0 0
    %637 = vmatprep.subr.bf16.mxu0 0
    %638 = vmatpush1.bf16.msra.mxu0 0
    %639 = vmatprep.subr.bf16.mxu0 0
    %640 = vmatpush1.bf16.msra.mxu0 0
    %641 = vmatprep.subr.bf16.mxu0 0
    %642 = vmatpush1.bf16.msra.mxu0 0
    %643 = vmatprep.subr.bf16.mxu0 0
    %644 = vmatpush1.bf16.msra.mxu0 0
    %645 = vmatprep.subr.bf16.mxu0 0
    %646 = vmatpush1.bf16.msra.mxu0 0
    %647 = vmatprep.subr.bf16.mxu0 0
    %648 = vmatpush1.bf16.msra.mxu0 0
    %649 = vmatprep.subr.bf16.mxu0 0
    %650 = vmatpush1.bf16.msra.mxu0 0
    %651 = vmatprep.subr.bf16.mxu0 0
    %652 = vmatpush1.bf16.msra.mxu0 0
    %653 = vmatprep.mubr.bf16.mxu0 0
    %654 = vmatmul.mubr.bf16.gmra.mrb[0].mxu0 %v426
    %v655 = vpop.f32.mrb[0].mxu0
    %v656 = vadd.f32 0.0, %v655
    %v657 = vpop.f32.mrb[0].mxu0
    %v658 = vpop.f32.mrb[0].mxu0
    %v659 = vpop.f32.mrb[0].mxu0
    %660 = vdwg.mxu0
    %662 = vrot.lane.b32.xlu0 %v493, 64
    %v663 = vpop.permute.xlu0 %662
    %v665 = vsel %vm143, %v663, 0
    %667 = vmatprep.subr.bf16.mxu0 0
    %668 = vmatpush1.bf16.msra.mxu0 %v570
    %669 = vmatprep.subr.bf16.mxu0 0
    %670 = vmatpush1.bf16.msra.mxu0 %v571
    %671 = vmatprep.subr.bf16.mxu0 0
    %672 = vmatpush1.bf16.msra.mxu0 0
    %673 = vmatprep.subr.bf16.mxu0 0
    %674 = vmatpush1.bf16.msra.mxu0 0
    %675 = vmatprep.subr.bf16.mxu0 0
    %676 = vmatpush1.bf16.msra.mxu0 0
    %677 = vmatprep.subr.bf16.mxu0 0
    %678 = vmatpush1.bf16.msra.mxu0 0
    %679 = vmatprep.subr.bf16.mxu0 0
    %680 = vmatpush1.bf16.msra.mxu0 0
    %681 = vmatprep.subr.bf16.mxu0 0
    %682 = vmatpush1.bf16.msra.mxu0 0
    %683 = vmatprep.subr.bf16.mxu0 0
    %684 = vmatpush1.bf16.msra.mxu0 0
    %685 = vmatprep.subr.bf16.mxu0 0
    %686 = vmatpush1.bf16.msra.mxu0 0
    %687 = vmatprep.subr.bf16.mxu0 0
    %688 = vmatpush1.bf16.msra.mxu0 0
    %689 = vmatprep.subr.bf16.mxu0 0
    %690 = vmatpush1.bf16.msra.mxu0 0
    %691 = vmatprep.subr.bf16.mxu0 0
    %692 = vmatpush1.bf16.msra.mxu0 0
    %693 = vmatprep.subr.bf16.mxu0 0
    %694 = vmatpush1.bf16.msra.mxu0 0
    %695 = vmatprep.subr.bf16.mxu0 0
    %696 = vmatpush1.bf16.msra.mxu0 0
    %697 = vmatprep.subr.bf16.mxu0 0
    %698 = vmatpush1.bf16.msra.mxu0 0
    %699 = vmatprep.mubr.bf16.mxu0 0
    %700 = vmatmul.mubr.bf16.gmra.mrb[0].mxu0 %v665
    %v701 = vpop.f32.mrb[0].mxu0
    %v702 = vadd.f32 %v656, %v701
    %v703 = vpop.f32.mrb[0].mxu0
    %v704 = vpop.f32.mrb[0].mxu0
    %v705 = vpop.f32.mrb[0].mxu0
    %706 = vdwg.mxu0
    %v707 = vadd.f32 %v702, %v618
    %v708 = vld [vmem:[%s8] sm:$0xf]
    %v709 = vld [vmem:[%s8 + $0x4] sm:$0xf]
    %v710 = vld [vmem:[%s8 + $0x8] sm:$0xf]
    %v711 = vld [vmem:[%s8 + $0xc] sm:$0xf]
    %v716 = vunpack.c.l.b16 %v708
    %v717 = vunpack.c.l.b16 %v709
    %v718 = vunpack.c.l.b16 %v710
    %v719 = vunpack.c.l.b16 %v711
    %v720 = vpack.c.b16 %v717, %v716
    %v721 = vpack.c.b16 %v719, %v718
    %724 = vmatprep.subr.bf16.mxu0 0
    %725 = vmatpush1.bf16.msra.mxu0 %v720
    %726 = vmatprep.subr.bf16.mxu0 0
    %727 = vmatpush1.bf16.msra.mxu0 %v721
    %728 = vmatprep.subr.bf16.mxu0 0
    %729 = vmatpush1.bf16.msra.mxu0 0
    %730 = vmatprep.subr.bf16.mxu0 0
    %731 = vmatpush1.bf16.msra.mxu0 0
    %732 = vmatprep.subr.bf16.mxu0 0
    %733 = vmatpush1.bf16.msra.mxu0 0
    %734 = vmatprep.subr.bf16.mxu0 0
    %735 = vmatpush1.bf16.msra.mxu0 0
    %736 = vmatprep.subr.bf16.mxu0 0
    %737 = vmatpush1.bf16.msra.mxu0 0
    %738 = vmatprep.subr.bf16.mxu0 0
    %739 = vmatpush1.bf16.msra.mxu0 0
    %740 = vmatprep.subr.bf16.mxu0 0
    %741 = vmatpush1.bf16.msra.mxu0 0
    %742 = vmatprep.subr.bf16.mxu0 0
    %743 = vmatpush1.bf16.msra.mxu0 0
    %744 = vmatprep.subr.bf16.mxu0 0
    %745 = vmatpush1.bf16.msra.mxu0 0
    %746 = vmatprep.subr.bf16.mxu0 0
    %747 = vmatpush1.bf16.msra.mxu0 0
    %748 = vmatprep.subr.bf16.mxu0 0
    %749 = vmatpush1.bf16.msra.mxu0 0
    %750 = vmatprep.subr.bf16.mxu0 0
    %751 = vmatpush1.bf16.msra.mxu0 0
    %752 = vmatprep.subr.bf16.mxu0 0
    %753 = vmatpush1.bf16.msra.mxu0 0
    %754 = vmatprep.subr.bf16.mxu0 0
    %755 = vmatpush1.bf16.msra.mxu0 0
    %756 = vmatprep.mubr.bf16.mxu0 0
    %757 = vmatmul.mubr.bf16.gmra.mrb[0].mxu0 %v145
    %v758 = vpop.f32.mrb[0].mxu0
    %v759 = vadd.f32 0.0, %v758
    %v760 = vpop.f32.mrb[0].mxu0
    %v761 = vpop.f32.mrb[0].mxu0
    %v762 = vpop.f32.mrb[0].mxu0
    %763 = vdwg.mxu0
    %v764 = vadd.f32 %v620, %v759
    %v765 = vxor.u32 %v764, 2147483648
    %v766 = vmul.f32 %v765, 1.442695
    %v767 = vpow.pop %v766
    %v768 = vadd.f32 %v767, 1.0
    %v769 = vrcp.pop %v768
    %v770 = vmul.f32 1.0, %v769
    %v771 = vtanh.pop %v764
    %v772 = vmul.f32 %v770, 0.0
    %774 = vrot.lane.b32.xlu0 %v771, 32
    %v775 = vpop.permute.xlu0 %774
    %v777 = vmul.f32 %v770, %v775
    %779 = vrot.lane.b32.xlu0 %v777, 32
    %v780 = vpop.permute.xlu0 %779
    %v782 = vadd.f32 %v772, %v780
    %v783 = vtanh.pop %v782
    %785 = vrot.lane.b32.xlu0 %v783, 32
    %v786 = vpop.permute.xlu0 %785
    %v788 = vmul.f32 %v770, %v786
    %v789 = vpack.c.bf16 %v788, %v788
    %791 = vrot.lane.b32.xlu0 %v789, 64
    %v792 = vpop.permute.xlu0 %791
    %v794 = vsel %vm143, %v792, 0
    %796 = vmatprep.subr.bf16.mxu0 0
    %797 = vmatpush1.bf16.msra.mxu0 %v720
    %798 = vmatprep.subr.bf16.mxu0 0
    %799 = vmatpush1.bf16.msra.mxu0 %v721
    %800 = vmatprep.subr.bf16.mxu0 0
    %801 = vmatpush1.bf16.msra.mxu0 0
    %802 = vmatprep.subr.bf16.mxu0 0
    %803 = vmatpush1.bf16.msra.mxu0 0
    %804 = vmatprep.subr.bf16.mxu0 0
    %805 = vmatpush1.bf16.msra.mxu0 0
    %806 = vmatprep.subr.bf16.mxu0 0
    %807 = vmatpush1.bf16.msra.mxu0 0
    %808 = vmatprep.subr.bf16.mxu0 0
    %809 = vmatpush1.bf16.msra.mxu0 0
    %810 = vmatprep.subr.bf16.mxu0 0
    %811 = vmatpush1.bf16.msra.mxu0 0
    %812 = vmatprep.subr.bf16.mxu0 0
    %813 = vmatpush1.bf16.msra.mxu0 0
    %814 = vmatprep.subr.bf16.mxu0 0
    %815 = vmatpush1.bf16.msra.mxu0 0
    %816 = vmatprep.subr.bf16.mxu0 0
    %817 = vmatpush1.bf16.msra.mxu0 0
    %818 = vmatprep.subr.bf16.mxu0 0
    %819 = vmatpush1.bf16.msra.mxu0 0
    %820 = vmatprep.subr.bf16.mxu0 0
    %821 = vmatpush1.bf16.msra.mxu0 0
    %822 = vmatprep.subr.bf16.mxu0 0
    %823 = vmatpush1.bf16.msra.mxu0 0
    %824 = vmatprep.subr.bf16.mxu0 0
    %825 = vmatpush1.bf16.msra.mxu0 0
    %826 = vmatprep.subr.bf16.mxu0 0
    %827 = vmatpush1.bf16.msra.mxu0 0
    %828 = vmatprep.mubr.bf16.mxu0 0
    %829 = vmatmul.mubr.bf16.gmra.mrb[0].mxu0 %v794
    %v830 = vpop.f32.mrb[0].mxu0
    %v831 = vadd.f32 0.0, %v830
    %v832 = vpop.f32.mrb[0].mxu0
    %v833 = vpop.f32.mrb[0].mxu0
    %v834 = vpop.f32.mrb[0].mxu0
    %835 = vdwg.mxu0
    %v836 = vadd.f32 %v707, %v831
    %v837 = vxor.u32 %v836, 2147483648
    %v838 = vmul.f32 %v837, 1.442695
    %v839 = vpow.pop %v838
    %v840 = vadd.f32 %v839, 1.0
    %v841 = vrcp.pop %v840
    %v842 = vmul.f32 1.0, %v841
    %v843 = vtanh.pop %v836
    %v844 = vmul.f32 %v842, %v782
    %846 = vrot.lane.b32.xlu0 %v843, 32
    %v847 = vpop.permute.xlu0 %846
    %v849 = vmul.f32 %v842, %v847
    %851 = vrot.lane.b32.xlu0 %v849, 32
    %v852 = vpop.permute.xlu0 %851
    %v854 = vadd.f32 %v844, %v852
    %v855 = vtanh.pop %v854
    %857 = vrot.lane.b32.xlu0 %v855, 32
    %v858 = vpop.permute.xlu0 %857
    %v860 = vmul.f32 %v842, %v858
    %v861 = vld [vmem:[%s10] sm:$0xf]
    %v862 = vld [vmem:[%s10 + $0x4] sm:$0xf]
    %v863 = vld [vmem:[%s10 + $0x8] sm:$0xf]
    %v864 = vld [vmem:[%s10 + $0xc] sm:$0xf]
    %v865 = vld [vmem:[%s10 + $0x10] sm:$0xf]
    %v866 = vld [vmem:[%s10 + $0x14] sm:$0xf]
    %v867 = vld [vmem:[%s10 + $0x18] sm:$0xf]
    %v868 = vld [vmem:[%s10 + $0x1c] sm:$0xf]
    %v869 = vld [vmem:[%s12] sm:$0x1]
    %v874 = vunpack.c.l.b16 %v865
    %v875 = vunpack.c.l.b16 %v866
    %v876 = vunpack.c.l.b16 %v867
    %v877 = vunpack.c.l.b16 %v868
    %v878 = vpack.c.b16 %v875, %v874
    %v879 = vpack.c.b16 %v877, %v876
    %882 = vmatprep.subr.bf16.mxu0 0
    %883 = vmatpush1.bf16.msra.mxu0 %v878
    %884 = vmatprep.subr.bf16.mxu0 0
    %885 = vmatpush1.bf16.msra.mxu0 %v879
    %886 = vmatprep.subr.bf16.mxu0 0
    %887 = vmatpush1.bf16.msra.mxu0 0
    %888 = vmatprep.subr.bf16.mxu0 0
    %889 = vmatpush1.bf16.msra.mxu0 0
    %890 = vmatprep.subr.bf16.mxu0 0
    %891 = vmatpush1.bf16.msra.mxu0 0
    %892 = vmatprep.subr.bf16.mxu0 0
    %893 = vmatpush1.bf16.msra.mxu0 0
    %894 = vmatprep.subr.bf16.mxu0 0
    %895 = vmatpush1.bf16.msra.mxu0 0
    %896 = vmatprep.subr.bf16.mxu0 0
    %897 = vmatpush1.bf16.msra.mxu0 0
    %898 = vmatprep.subr.bf16.mxu0 0
    %899 = vmatpush1.bf16.msra.mxu0 0
    %900 = vmatprep.subr.bf16.mxu0 0
    %901 = vmatpush1.bf16.msra.mxu0 0
    %902 = vmatprep.subr.bf16.mxu0 0
    %903 = vmatpush1.bf16.msra.mxu0 0
    %904 = vmatprep.subr.bf16.mxu0 0
    %905 = vmatpush1.bf16.msra.mxu0 0
    %906 = vmatprep.subr.bf16.mxu0 0
    %907 = vmatpush1.bf16.msra.mxu0 0
    %908 = vmatprep.subr.bf16.mxu0 0
    %909 = vmatpush1.bf16.msra.mxu0 0
    %910 = vmatprep.subr.bf16.mxu0 0
    %911 = vmatpush1.bf16.msra.mxu0 0
    %912 = vmatprep.subr.bf16.mxu0 0
    %913 = vmatpush1.bf16.msra.mxu0 0
    %914 = vmatprep.mubr.bf16.mxu0 0
    %915 = vmatmul.mubr.bf16.gmra.mrb[0].mxu0 %v520
    %v916 = vpop.f32.mrb[0].mxu0
    %v917 = vadd.f32 0.0, %v916
    %v918 = vpop.f32.mrb[0].mxu0
    %v919 = vpop.f32.mrb[0].mxu0
    %v920 = vpop.f32.mrb[0].mxu0
    %921 = vdwg.mxu0
    %v926 = vunpack.c.l.b16 %v861
    %v927 = vunpack.c.l.b16 %v862
    %v928 = vunpack.c.l.b16 %v863
    %v929 = vunpack.c.l.b16 %v864
    %v930 = vpack.c.b16 %v927, %v926
    %v931 = vpack.c.b16 %v929, %v928
    %934 = vmatprep.subr.bf16.mxu0 0
    %935 = vmatpush1.bf16.msra.mxu0 %v930
    %936 = vmatprep.subr.bf16.mxu0 0
    %937 = vmatpush1.bf16.msra.mxu0 %v931
    %938 = vmatprep.subr.bf16.mxu0 0
    %939 = vmatpush1.bf16.msra.mxu0 0
    %940 = vmatprep.subr.bf16.mxu0 0
    %941 = vmatpush1.bf16.msra.mxu0 0
    %942 = vmatprep.subr.bf16.mxu0 0
    %943 = vmatpush1.bf16.msra.mxu0 0
    %944 = vmatprep.subr.bf16.mxu0 0
    %945 = vmatpush1.bf16.msra.mxu0 0
    %946 = vmatprep.subr.bf16.mxu0 0
    %947 = vmatpush1.bf16.msra.mxu0 0
    %948 = vmatprep.subr.bf16.mxu0 0
    %949 = vmatpush1.bf16.msra.mxu0 0
    %950 = vmatprep.subr.bf16.mxu0 0
    %951 = vmatpush1.bf16.msra.mxu0 0
    %952 = vmatprep.subr.bf16.mxu0 0
    %953 = vmatpush1.bf16.msra.mxu0 0
    %954 = vmatprep.subr.bf16.mxu0 0
    %955 = vmatpush1.bf16.msra.mxu0 0
    %956 = vmatprep.subr.bf16.mxu0 0
    %957 = vmatpush1.bf16.msra.mxu0 0
    %958 = vmatprep.subr.bf16.mxu0 0
    %959 = vmatpush1.bf16.msra.mxu0 0
    %960 = vmatprep.subr.bf16.mxu0 0
    %961 = vmatpush1.bf16.msra.mxu0 0
    %962 = vmatprep.subr.bf16.mxu0 0
    %963 = vmatpush1.bf16.msra.mxu0 0
    %964 = vmatprep.subr.bf16.mxu0 0
    %965 = vmatpush1.bf16.msra.mxu0 0
    %966 = vmatprep.mubr.bf16.mxu0 0
    %967 = vmatmul.mubr.bf16.gmra.mrb[0].mxu0 %v217
    %v968 = vpop.f32.mrb[0].mxu0
    %v969 = vadd.f32 %v917, %v968
    %v970 = vpop.f32.mrb[0].mxu0
    %v971 = vpop.f32.mrb[0].mxu0
    %v972 = vpop.f32.mrb[0].mxu0
    %973 = vdwg.mxu0
    %v975 = vlaneseq
    %v976 = vshrl.u32 %v975, 7
    %v977 = vsub.s32 0, %v976
    %v978 = vrot.slane %v869, %v977
    %v980 = vadd.f32 %v969, %v978
    %981 = vmatprep.subr.bf16.mxu0 0
    %982 = vmatpush1.bf16.msra.mxu0 %v878
    %983 = vmatprep.subr.bf16.mxu0 0
    %984 = vmatpush1.bf16.msra.mxu0 %v879
    %985 = vmatprep.subr.bf16.mxu0 0
    %986 = vmatpush1.bf16.msra.mxu0 0
    %987 = vmatprep.subr.bf16.mxu0 0
    %988 = vmatpush1.bf16.msra.mxu0 0
    %989 = vmatprep.subr.bf16.mxu0 0
    %990 = vmatpush1.bf16.msra.mxu0 0
    %991 = vmatprep.subr.bf16.mxu0 0
    %992 = vmatpush1.bf16.msra.mxu0 0
    %993 = vmatprep.subr.bf16.mxu0 0
    %994 = vmatpush1.bf16.msra.mxu0 0
    %995 = vmatprep.subr.bf16.mxu0 0
    %996 = vmatpush1.bf16.msra.mxu0 0
    %997 = vmatprep.subr.bf16.mxu0 0
    %998 = vmatpush1.bf16.msra.mxu0 0
    %999 = vmatprep.subr.bf16.mxu0 0
    %1000 = vmatpush1.bf16.msra.mxu0 0
    %1001 = vmatprep.subr.bf16.mxu0 0
    %1002 = vmatpush1.bf16.msra.mxu0 0
    %1003 = vmatprep.subr.bf16.mxu0 0
    %1004 = vmatpush1.bf16.msra.mxu0 0
    %1005 = vmatprep.subr.bf16.mxu0 0
    %1006 = vmatpush1.bf16.msra.mxu0 0
    %1007 = vmatprep.subr.bf16.mxu0 0
    %1008 = vmatpush1.bf16.msra.mxu0 0
    %1009 = vmatprep.subr.bf16.mxu0 0
    %1010 = vmatpush1.bf16.msra.mxu0 0
    %1011 = vmatprep.subr.bf16.mxu0 0
    %1012 = vmatpush1.bf16.msra.mxu0 0
    %1013 = vmatprep.mubr.bf16.mxu0 0
    %1014 = vmatmul.mubr.bf16.gmra.mrb[0].mxu0 %v426
    %v1015 = vpop.f32.mrb[0].mxu0
    %v1016 = vadd.f32 0.0, %v1015
    %v1017 = vpop.f32.mrb[0].mxu0
    %v1018 = vpop.f32.mrb[0].mxu0
    %v1019 = vpop.f32.mrb[0].mxu0
    %1020 = vdwg.mxu0
    %1021 = vmatprep.subr.bf16.mxu0 0
    %1022 = vmatpush1.bf16.msra.mxu0 %v930
    %1023 = vmatprep.subr.bf16.mxu0 0
    %1024 = vmatpush1.bf16.msra.mxu0 %v931
    %1025 = vmatprep.subr.bf16.mxu0 0
    %1026 = vmatpush1.bf16.msra.mxu0 0
    %1027 = vmatprep.subr.bf16.mxu0 0
    %1028 = vmatpush1.bf16.msra.mxu0 0
    %1029 = vmatprep.subr.bf16.mxu0 0
    %1030 = vmatpush1.bf16.msra.mxu0 0
    %1031 = vmatprep.subr.bf16.mxu0 0
    %1032 = vmatpush1.bf16.msra.mxu0 0
    %1033 = vmatprep.subr.bf16.mxu0 0
    %1034 = vmatpush1.bf16.msra.mxu0 0
    %1035 = vmatprep.subr.bf16.mxu0 0
    %1036 = vmatpush1.bf16.msra.mxu0 0
    %1037 = vmatprep.subr.bf16.mxu0 0
    %1038 = vmatpush1.bf16.msra.mxu0 0
    %1039 = vmatprep.subr.bf16.mxu0 0
    %1040 = vmatpush1.bf16.msra.mxu0 0
    %1041 = vmatprep.subr.bf16.mxu0 0
    %1042 = vmatpush1.bf16.msra.mxu0 0
    %1043 = vmatprep.subr.bf16.mxu0 0
    %1044 = vmatpush1.bf16.msra.mxu0 0
    %1045 = vmatprep.subr.bf16.mxu0 0
    %1046 = vmatpush1.bf16.msra.mxu0 0
    %1047 = vmatprep.subr.bf16.mxu0 0
    %1048 = vmatpush1.bf16.msra.mxu0 0
    %1049 = vmatprep.subr.bf16.mxu0 0
    %1050 = vmatpush1.bf16.msra.mxu0 0
    %1051 = vmatprep.subr.bf16.mxu0 0
    %1052 = vmatpush1.bf16.msra.mxu0 0
    %1053 = vmatprep.mubr.bf16.mxu0 0
    %1054 = vmatmul.mubr.bf16.gmra.mrb[0].mxu0 %v665
    %v1055 = vpop.f32.mrb[0].mxu0
    %v1056 = vadd.f32 %v1016, %v1055
    %v1057 = vpop.f32.mrb[0].mxu0
    %v1058 = vpop.f32.mrb[0].mxu0
    %v1059 = vpop.f32.mrb[0].mxu0
    %1060 = vdwg.mxu0
    %v1061 = vadd.f32 %v1056, %v978
    %v1062 = vld [vmem:[%s11] sm:$0xf]
    %v1063 = vld [vmem:[%s11 + $0x4] sm:$0xf]
    %v1064 = vld [vmem:[%s11 + $0x8] sm:$0xf]
    %v1065 = vld [vmem:[%s11 + $0xc] sm:$0xf]
    %v1070 = vunpack.c.l.b16 %v1062
    %v1071 = vunpack.c.l.b16 %v1063
    %v1072 = vunpack.c.l.b16 %v1064
    %v1073 = vunpack.c.l.b16 %v1065
    %v1074 = vpack.c.b16 %v1071, %v1070
    %v1075 = vpack.c.b16 %v1073, %v1072
    %1078 = vmatprep.subr.bf16.mxu0 0
    %1079 = vmatpush1.bf16.msra.mxu0 %v1074
    %1080 = vmatprep.subr.bf16.mxu0 0
    %1081 = vmatpush1.bf16.msra.mxu0 %v1075
    %1082 = vmatprep.subr.bf16.mxu0 0
    %1083 = vmatpush1.bf16.msra.mxu0 0
    %1084 = vmatprep.subr.bf16.mxu0 0
    %1085 = vmatpush1.bf16.msra.mxu0 0
    %1086 = vmatprep.subr.bf16.mxu0 0
    %1087 = vmatpush1.bf16.msra.mxu0 0
    %1088 = vmatprep.subr.bf16.mxu0 0
    %1089 = vmatpush1.bf16.msra.mxu0 0
    %1090 = vmatprep.subr.bf16.mxu0 0
    %1091 = vmatpush1.bf16.msra.mxu0 0
    %1092 = vmatprep.subr.bf16.mxu0 0
    %1093 = vmatpush1.bf16.msra.mxu0 0
    %1094 = vmatprep.subr.bf16.mxu0 0
    %1095 = vmatpush1.bf16.msra.mxu0 0
    %1096 = vmatprep.subr.bf16.mxu0 0
    %1097 = vmatpush1.bf16.msra.mxu0 0
    %1098 = vmatprep.subr.bf16.mxu0 0
    %1099 = vmatpush1.bf16.msra.mxu0 0
    %1100 = vmatprep.subr.bf16.mxu0 0
    %1101 = vmatpush1.bf16.msra.mxu0 0
    %1102 = vmatprep.subr.bf16.mxu0 0
    %1103 = vmatpush1.bf16.msra.mxu0 0
    %1104 = vmatprep.subr.bf16.mxu0 0
    %1105 = vmatpush1.bf16.msra.mxu0 0
    %1106 = vmatprep.subr.bf16.mxu0 0
    %1107 = vmatpush1.bf16.msra.mxu0 0
    %1108 = vmatprep.subr.bf16.mxu0 0
    %1109 = vmatpush1.bf16.msra.mxu0 0
    %1110 = vmatprep.mubr.bf16.mxu0 0
    %1111 = vmatmul.mubr.bf16.gmra.mrb[0].mxu0 %v145
    %v1112 = vpop.f32.mrb[0].mxu0
    %v1113 = vadd.f32 0.0, %v1112
    %v1114 = vpop.f32.mrb[0].mxu0
    %v1115 = vpop.f32.mrb[0].mxu0
    %v1116 = vpop.f32.mrb[0].mxu0
    %1117 = vdwg.mxu0
    %v1118 = vadd.f32 %v1061, %v1113
    %v1119 = vxor.u32 %v1118, 2147483648
    %v1120 = vmul.f32 %v1119, 1.442695
    %v1121 = vpow.pop %v1120
    %v1122 = vadd.f32 %v1121, 1.0
    %v1123 = vrcp.pop %v1122
    %v1124 = vmul.f32 1.0, %v1123
    %v1125 = vtanh.pop %v1118
    %v1126 = vmul.f32 %v1124, 0.0
    %1128 = vrot.lane.b32.xlu0 %v1125, 32
    %v1129 = vpop.permute.xlu0 %1128
    %v1131 = vmul.f32 %v1124, %v1129
    %1133 = vrot.lane.b32.xlu0 %v1131, 32
    %v1134 = vpop.permute.xlu0 %1133
    %v1136 = vadd.f32 %v1126, %v1134
    %v1137 = vtanh.pop %v1136
    %1139 = vrot.lane.b32.xlu0 %v1137, 32
    %v1140 = vpop.permute.xlu0 %1139
    %v1142 = vmul.f32 %v1124, %v1140
    %v1143 = vpack.c.bf16 %v1142, %v1142
    %1145 = vrot.lane.b32.xlu0 %v1143, 64
    %v1146 = vpop.permute.xlu0 %1145
    %v1148 = vsel %vm143, %v1146, 0
    %1150 = vmatprep.subr.bf16.mxu0 0
    %1151 = vmatpush1.bf16.msra.mxu0 %v1074
    %1152 = vmatprep.subr.bf16.mxu0 0
    %1153 = vmatpush1.bf16.msra.mxu0 %v1075
    %1154 = vmatprep.subr.bf16.mxu0 0
    %1155 = vmatpush1.bf16.msra.mxu0 0
    %1156 = vmatprep.subr.bf16.mxu0 0
    %1157 = vmatpush1.bf16.msra.mxu0 0
    %1158 = vmatprep.subr.bf16.mxu0 0
    %1159 = vmatpush1.bf16.msra.mxu0 0
    %1160 = vmatprep.subr.bf16.mxu0 0
    %1161 = vmatpush1.bf16.msra.mxu0 0
    %1162 = vmatprep.subr.bf16.mxu0 0
    %1163 = vmatpush1.bf16.msra.mxu0 0
    %1164 = vmatprep.subr.bf16.mxu0 0
    %1165 = vmatpush1.bf16.msra.mxu0 0
    %1166 = vmatprep.subr.bf16.mxu0 0
    %1167 = vmatpush1.bf16.msra.mxu0 0
    %1168 = vmatprep.subr.bf16.mxu0 0
    %1169 = vmatpush1.bf16.msra.mxu0 0
    %1170 = vmatprep.subr.bf16.mxu0 0
    %1171 = vmatpush1.bf16.msra.mxu0 0
    %1172 = vmatprep.subr.bf16.mxu0 0
    %1173 = vmatpush1.bf16.msra.mxu0 0
    %1174 = vmatprep.subr.bf16.mxu0 0
    %1175 = vmatpush1.bf16.msra.mxu0 0
    %1176 = vmatprep.subr.bf16.mxu0 0
    %1177 = vmatpush1.bf16.msra.mxu0 0
    %1178 = vmatprep.subr.bf16.mxu0 0
    %1179 = vmatpush1.bf16.msra.mxu0 0
    %1180 = vmatprep.subr.bf16.mxu0 0
    %1181 = vmatpush1.bf16.msra.mxu0 0
    %1182 = vmatprep.mubr.bf16.mxu0 0
    %1183 = vmatmul.mubr.bf16.gmra.mrb[0].mxu0 %v1148
    %v1184 = vpop.f32.mrb[0].mxu0
    %v1185 = vadd.f32 0.0, %v1184
    %v1186 = vpop.f32.mrb[0].mxu0
    %v1187 = vpop.f32.mrb[0].mxu0
    %v1188 = vpop.f32.mrb[0].mxu0
    %1189 = vdwg.mxu0
    %v1190 = vadd.f32 %v980, %v1185
    %v1191 = vxor.u32 %v1190, 2147483648
    %v1192 = vmul.f32 %v1191, 1.442695
    %v1193 = vpow.pop %v1192
    %v1194 = vadd.f32 %v1193, 1.0
    %v1195 = vrcp.pop %v1194
    %v1196 = vmul.f32 1.0, %v1195
    %v1197 = vtanh.pop %v1190
    %v1198 = vmul.f32 %v1196, %v1136
    %1200 = vrot.lane.b32.xlu0 %v1197, 32
    %v1201 = vpop.permute.xlu0 %1200
    %v1203 = vmul.f32 %v1196, %v1201
    %1205 = vrot.lane.b32.xlu0 %v1203, 32
    %v1206 = vpop.permute.xlu0 %1205
    %v1208 = vadd.f32 %v1198, %v1206
    %v1209 = vtanh.pop %v1208
    %1211 = vrot.lane.b32.xlu0 %v1209, 32
    %v1212 = vpop.permute.xlu0 %1211
    %v1214 = vmul.f32 %v1196, %v1212
    %1216 = vrot.lane.b32.xlu0 %v283, 64
    %v1217 = vpop.permute.xlu0 %1216
    %1219 = vst.msk [vmem:[#allocation3] sm:$0xff] %vm143, %v1217
    %1221 = vrot.lane.b32.xlu0 %v492, 64
    %v1222 = vpop.permute.xlu0 %1221
    %s1224 = scalar_lea.vmem [#allocation3], 8
    %1225 = vst.msk [vmem:[%s1224] sm:$0xff] %vm143, %v1222
    %1227 = vrot.lane.b32.xlu0 %v860, 64
    %v1228 = vpop.permute.xlu0 %1227
    %s1230 = scalar_lea.vmem [#allocation3], 16
    %1231 = vst.msk [vmem:[%s1230] sm:$0xff] %vm143, %v1228
    %1233 = vrot.lane.b32.xlu0 %v1214, 64
    %v1234 = vpop.permute.xlu0 %1233
    %s1236 = scalar_lea.vmem [#allocation3], 24
    %1237 = vst.msk [vmem:[%s1236] sm:$0xff] %vm143, %v1234
    %1239 = vrot.lane.b32.xlu0 %v277, 96
    %v1240 = vpop.permute.xlu0 %1239
    %1242 = vst.msk [vmem:[#allocation5] sm:$0xff] %vm143, %v1240
    %1244 = vrot.lane.b32.xlu0 %v486, 96
    %v1245 = vpop.permute.xlu0 %1244
    %s1247 = scalar_lea.vmem [#allocation5], 8
    %1248 = vst.msk [vmem:[%s1247] sm:$0xff] %vm143, %v1245
    %1250 = vrot.lane.b32.xlu0 %v854, 96
    %v1251 = vpop.permute.xlu0 %1250
    %s1253 = scalar_lea.vmem [#allocation5], 16
    %1254 = vst.msk [vmem:[%s1253] sm:$0xff] %vm143, %v1251
    %1256 = vrot.lane.b32.xlu0 %v1208, 96
    %v1257 = vpop.permute.xlu0 %1256
    %s1259 = scalar_lea.vmem [#allocation5], 24
    %1260 = vst.msk [vmem:[%s1259] sm:$0xff] %vm143, %v1257
    %v1261 = vld [vmem:[%s13] sm:$0xff]
    %v1262 = vld [vmem:[%s14] sm:$0xff]
    %v1263 = vld [vmem:[%s15] sm:$0xff]
    %v1264 = vadd.f32 %v788, 0.0
    %v1265 = vadd.f32 %v1264, %v860
    %v1266 = vmul.f32 %v1265, 0.5
    %v1267 = vadd.f32 %v1214, 0.0
    %v1268 = vadd.f32 %v1267, %v1142
    %v1269 = vmul.f32 %v1268, 0.5
    %v1270 = vsub.f32 %v788, %v1266
    %v1271 = vmul.f32 %v1270, %v1270
    %v1272 = vadd.f32 %v1271, 0.0
    %v1273 = vsub.f32 %v860, %v1266
    %v1274 = vmul.f32 %v1273, %v1273
    %v1275 = vadd.f32 %v1272, %v1274
    %v1276 = vmul.f32 %v1275, 0.5
    %v1277 = vsub.f32 %v1214, %v1269
    %v1278 = vmul.f32 %v1277, %v1277
    %v1279 = vadd.f32 %v1278, 0.0
    %v1280 = vsub.f32 %v1142, %v1269
    %v1281 = vmul.f32 %v1280, %v1280
    %v1282 = vadd.f32 %v1279, %v1281
    %v1283 = vmul.f32 %v1282, 0.5
    %v1284 = vadd.f32 %v1276, 1e-05
    %v1285 = vrsqrt.pop %v1284
    %1287 = vrot.lane.b32.xlu0 %v1285, 64
    %v1288 = vpop.permute.xlu0 %1287
    %v1290 = vmul.f32 %v1261, %v1288
    %v1291 = vmul.f32 %v1290, %v1263
    %v1292 = vadd.f32 %v1283, 1e-05
    %v1293 = vrsqrt.pop %v1292
    %1295 = vrot.lane.b32.xlu0 %v1293, 96
    %v1296 = vpop.permute.xlu0 %1295
    %v1298 = vmul.f32 %v1261, %v1296
    %v1299 = vmul.f32 %v1298, %v1263
    %v1300 = vmul.f32 %v1262, %v1263
    %1302 = vrot.lane.b32.xlu0 %v1300, 96
    %v1303 = vpop.permute.xlu0 %1302
    %v1305 = vadd.f32 %v1300, %v1303
    %v1306 = vsel %vm143, %v1305, 0.0
    %1307 = vadd.xlane.f32.xlu0 %v1306
    %v1308 = vpop.xlane.xlu0 %1307
    %v1309 = vrot.slane %v1308, 4
    %v1310 = vadd.f32 %v1308, %v1309
    %v1311 = vrot.slane %v1310, 2
    %v1312 = vadd.f32 %v1310, %v1311
    %v1313 = vrot.slane %v1312, 1
    %v1314 = vadd.f32 %v1312, %v1313
    %v1315 = vld [vmem:[#allocation2] sm:$0x1]
    %v1316 = vadd.f32 %v1314, %v1315
    %1318 = vrot.lane.b32.xlu0 %v1291, 64
    %v1319 = vpop.permute.xlu0 %1318
    %v1321 = vmul.f32 %v1270, %v1319
    %1323 = vrot.lane.b32.xlu0 %v1299, 32
    %v1324 = vpop.permute.xlu0 %1323
    %v1326 = vmul.f32 %v1277, %v1324
    %v1327 = vadd.f32 %v1321, %v1326
    %1329 = vrot.lane.b32.xlu0 %v1327, 64
    %v1330 = vpop.permute.xlu0 %1329
    %v1332 = vsel %vm143, %v1330, 0.0
    %1333 = vadd.xlane.f32.xlu0 %v1332
    %v1334 = vpop.xlane.xlu0 %1333
    %v1335 = vrot.slane %v1334, 4
    %v1336 = vadd.f32 %v1334, %v1335
    %v1337 = vrot.slane %v1336, 2
    %v1338 = vadd.f32 %v1336, %v1337
    %v1339 = vrot.slane %v1338, 1
    %v1340 = vadd.f32 %v1338, %v1339
    %v1341 = vmul.f32 %v1273, %v1319
    %v1342 = vmul.f32 %v1280, %v1324
    %v1343 = vadd.f32 %v1341, %v1342
    %1345 = vrot.lane.b32.xlu0 %v1343, 64
    %v1346 = vpop.permute.xlu0 %1345
    %v1348 = vsel %vm143, %v1346, 0.0
    %1349 = vadd.xlane.f32.xlu0 %v1348
    %v1350 = vpop.xlane.xlu0 %1349
    %v1351 = vrot.slane %v1350, 4
    %v1352 = vadd.f32 %v1350, %v1351
    %v1353 = vrot.slane %v1352, 2
    %v1354 = vadd.f32 %v1352, %v1353
    %v1355 = vrot.slane %v1354, 1
    %v1356 = vadd.f32 %v1354, %v1355
    %v1357 = vlaneseq
    %v1358 = vshrl.u32 %v1357, 7
    %vm1359 = vcmp.eq.s32.totalorder %v1358, 0
    %v1360 = vsel %vm1359, %v1340, 0.0
    %v1361 = vadd.f32 %v1360, 0.0
    %vm1362 = vcmp.eq.s32.totalorder %v1358, 1
    %v1363 = vsel %vm1362, %v1356, 0.0
    %v1364 = vadd.f32 %v1361, %v1363
    %v1366 = vlaneseq
    %v1367 = vshrl.u32 %v1366, 7
    %v1368 = vsub.s32 0, %v1367
    %v1369 = vrot.slane %v1316, %v1368
    %v1371 = vadd.f32 %v1364, %v1369
    %v1372 = vxor.u32 %v1371, 2147483648
    %v1373 = vmul.f32 %v1372, 1.442695
    %v1374 = vpow.pop %v1373
    %v1375 = vadd.f32 %v1374, 1.0
    %v1376 = vrcp.pop %v1375
    %v1377 = vmul.f32 1.0, %v1376
    %vm1378 = vcmask 1024
    %1379 = vst.msk [vmem:[%s17] sm:$0x3] %vm1378, %v1377
    // Predicated region
    $region70: #{rnn_discriminator_forward.1} parent=1 // pred_check
      _
    $region71: #{rnn_discriminator_forward.1} parent=1 // pred_check_branch
      %1381 = sbr.rel (0) target = $region73
    $region72: #{rnn_discriminator_forward.1} parent=1 // pred_region
      _
    $region73: #{rnn_discriminator_forward.1} parent=1 // pred_fallthru
      _
    // Predicated region
    $region74: #{rnn_discriminator_forward.1} parent=1 // pred_check
      _
    $region75: #{rnn_discriminator_forward.1} parent=1 // pred_check_branch
      %1383 = sbr.rel (0) target = $region77
    $region76: #{rnn_discriminator_forward.1} parent=1 // pred_region
      %s1385 = ssub.s32 512, 512
      %1386 = vsyncadd [#allocation4], %s1385
      %s1387 = sshll.u32 [#allocation3], 4
      %s1388 = int_to_ptr.vmem [resolvable:$true] %s1387
      %1393 = dma.vmem_to_hbm [thread:$0]  %s1388, 512, %s18, [#allocation4], 128, 128, 8
    $region77: #{rnn_discriminator_forward.1} parent=1 // pred_fallthru
      _
    // Predicated region
    $region78: #{rnn_discriminator_forward.1} parent=1 // pred_check
      _
    $region79: #{rnn_discriminator_forward.1} parent=1 // pred_check_branch
      %1395 = sbr.rel (0) target = $region81
    $region80: #{rnn_discriminator_forward.1} parent=1 // pred_region
      %s1397 = ssub.s32 512, 512
      %1398 = vsyncadd [#allocation6], %s1397
      %s1399 = sshll.u32 [#allocation5], 4
      %s1400 = int_to_ptr.vmem [resolvable:$true] %s1399
      %1405 = dma.vmem_to_hbm [thread:$0]  %s1400, 512, %s19, [#allocation6], 128, 128, 8
    $region81: #{rnn_discriminator_forward.1} parent=1 // pred_fallthru
      _
    // Predicated region
    $region82: #{rnn_discriminator_forward.1} parent=1 // pred_check
      _
    $region83: #{rnn_discriminator_forward.1} parent=1 // pred_check_branch
      %1407 = sbr.rel (0) target = $region85
    $region84: #{rnn_discriminator_forward.1} parent=1 // pred_region
      _
    $region85: #{rnn_discriminator_forward.1} parent=1 // pred_fallthru
      _
    // Predicated region
    $region86: #{rnn_discriminator_forward.1} parent=1 // pred_check
      _
    $region87: #{rnn_discriminator_forward.1} parent=1 // pred_check_branch
      %1409 = sbr.rel (0) target = $region89
    $region88: #{rnn_discriminator_forward.1} parent=1 // pred_region
      %1410 = dma.done [#allocation4], 512
    $region89: #{rnn_discriminator_forward.1} parent=1 // pred_fallthru
      _
    // Predicated region
    $region90: #{rnn_discriminator_forward.1} parent=1 // pred_check
      _
    $region91: #{rnn_discriminator_forward.1} parent=1 // pred_check_branch
      %1412 = sbr.rel (0) target = $region93
    $region92: #{rnn_discriminator_forward.1} parent=1 // pred_region
      %1413 = dma.done [#allocation6], 512
    $region93: #{rnn_discriminator_forward.1} parent=1 // pred_fallthru
      _
    %1414 = vsyncpa [#allocation4], 1
    %1415 = vsyncpa [#allocation6], 1

</llo_original>
